<compile_context>
chip_gen: v6e
topology: v6e:2x2x1
jax: 0.10.0
libtpu: 0.0.40
codegen_flags: <defaults>
</compile_context>

<pallas_src>
import jax
import jax.numpy as jnp
from jax import lax
from jax.experimental import pallas as pl
from jax.experimental.pallas import tpu as pltpu


def _round_up(v, m):
    return -(-v // m) * m


# ----------------------------- Pallas kernel -------------------------------
def _make_tta_kernel(K, Wp, Cin_pad, Cout, G, Lseg, Lout):
    """TTA conv+ReLU+average kernel for static shapes.

    Kernel refs:
      x_ref : (Cin_pad, A) f32   rotated inputs, channel rows (padded to 8),
                                 rotations stacked on the lane axis in
                                 128-aligned segments of width Lseg, rows AND
                                 columns zero-padded, guard lanes on both ends
                                 so tap shifts never leave the array.
      w_ref : (Cout, K*K*Cin_pad) im2col weight tile (tap-major, channel-minor).
      b_ref : (Cout, 1)           conv bias.
      o_ref : (Cout, Lseg)        averaged prediction (still padded; guard /
                                  pad rows+cols are stripped by the wrapper).
    """
    pad = K // 2

    def kernel(x_ref, w_ref, b_ref, o_ref):
        # Build the (K*K*Cin_pad, Lout) im2col slab from statically shifted,
        # full-8-sublane lane slices.  Column zero-padding on the host makes
        # every tap a pure shift -> no masks / selects.
        pieces = []
        for dh in range(K):
            for dw in range(K):
                s = (dh - pad) * Wp + (dw - pad)
                pieces.append(x_ref[:, pl.ds(G + s, Lout)])      # (Cin_pad, Lout)
        slab = jnp.concatenate(pieces, axis=0)                   # (K*K*Cin_pad, Lout)

        # One MXU contraction for all taps, channels and all 4 rotations.
        y = jnp.dot(w_ref[...], slab,
                    preferred_element_type=jnp.float32)          # (Cout, Lout)

        # base(): bias + ReLU, applied once across all 4 rotation lane-groups
        # (single bias broadcast, single ReLU pass).
        z = jnp.maximum(y + b_ref[...], 0.0)

        # TTA average: 3 lane-aligned adds over the 128-aligned segments + scale.
        acc = (z[:, 0 * Lseg:1 * Lseg] + z[:, 1 * Lseg:2 * Lseg]
               + z[:, 2 * Lseg:3 * Lseg] + z[:, 3 * Lseg:4 * Lseg])
        o_ref[...] = acc * 0.25

    return kernel


def _tta_pallas(xflat, wt, b2, *, K, Wp, Cin_pad, Cout, G, Lseg, Lout):
    kernel = _make_tta_kernel(K, Wp, Cin_pad, Cout, G, Lseg, Lout)
    return pl.pallas_call(
        kernel,
        out_shape=jax.ShapeDtypeStruct((Cout, Lseg), jnp.float32),
        in_specs=[
            pl.BlockSpec(memory_space=pltpu.MemorySpace.VMEM),
            pl.BlockSpec(memory_space=pltpu.MemorySpace.VMEM),
            pl.BlockSpec(memory_space=pltpu.MemorySpace.VMEM),
        ],
        out_specs=pl.BlockSpec(memory_space=pltpu.MemorySpace.VMEM),
    )(xflat, wt, b2)


# ------------------------------ JAX glue ------------------------------------
def tta_forward(x, weight, bias):
    """TTA forward: mean over r of ReLU(conv3x3(rot90(x, r)) + b). NCHW in/out."""
    N, Cin, H, W = x.shape
    Cout, _, K, _ = weight.shape
    assert H == W, "TTA rot90 averaging requires square spatial dims"
    R, pad = 4, K // 2
    Hp, Wp = H + 2 * pad, W + 2 * pad
    Lp = N * Hp * Wp                              # flattened (n, row, col), padded
    Cin_pad = _round_up(Cin, 8)                   # 8-sublane aligned channel block
    shift_max = pad * Wp + pad                    # largest |tap lane shift|
    E = _round_up(shift_max, 8)                   # per-segment left guard
    G = _round_up(shift_max, 8)                   # global guard
    Lseg = _round_up(E + Lp + shift_max, 128)     # 128-aligned rotation segment
    Lout = R * Lseg                               # matmul output width (lane-dense)
    A = _round_up(Lout + 2 * G, 128)              # total input lane width

    # 1) the four rot90 views of the raw input (exactly what the module does)
    rots = jnp.stack([jnp.rot90(x, k=r, axes=(-1, -2)) for r in range(R)], 0)
    # 2) channel-major, zero-pad rows AND columns, flatten (n, row, col) onto
    #    one lane axis; pad Cin -> 8 channels; place each rotation in its own
    #    128-aligned lane segment with guard lanes for the in-kernel tap shifts.
    xr = jnp.transpose(rots, (0, 2, 1, 3, 4))                     # (R, Cin, N, H, W)
    xr = jnp.pad(xr, ((0, 0), (0, 0), (0, 0), (pad, pad), (pad, pad)))
    xr = xr.reshape(R, Cin, Lp)
    xr = jnp.pad(xr, ((0, 0), (0, Cin_pad - Cin), (E, Lseg - E - Lp)))  # (R, 8, Lseg)
    xflat = jnp.transpose(xr, (1, 0, 2)).reshape(Cin_pad, Lout)   # rotations on lanes
    xflat = jnp.pad(xflat, ((0, 0), (G, A - Lout - G))).astype(jnp.float32)

    # 3) single lane-dense im2col weight tile (tap-major, channel-minor) + bias
    w_pad = jnp.pad(weight, ((0, 0), (0, Cin_pad - Cin), (0, 0), (0, 0)))
    wt = jnp.transpose(w_pad, (0, 2, 3, 1)).reshape(Cout, K * K * Cin_pad)
    wt = wt.astype(jnp.float32)
    b2 = bias.reshape(Cout, 1).astype(jnp.float32)

    out = _tta_pallas(xflat, wt, b2, K=K, Wp=Wp, Cin_pad=Cin_pad, Cout=Cout,
                      G=G, Lseg=Lseg, Lout=Lout)                  # (Cout, Lseg)

    # strip guard lanes and the pad rows/cols, return NCHW
    out = out[:, E:E + Lp].reshape(Cout, N, Hp, Wp)[:, :, pad:pad + H, pad:pad + W]
    return jnp.transpose(out, (1, 0, 2, 3))


# ------------------------------ Reference -----------------------------------
def tta_reference(x, weight, bias):
    def base(xr):
        y = lax.conv_general_dilated(
            xr, weight, window_strides=(1, 1), padding="SAME",
            dimension_numbers=("NCHW", "OIHW", "NCHW"))
        return jnp.maximum(y + bias[None, :, None, None], 0.0)
    preds = [base(jnp.rot90(x, k=r, axes=(-1, -2))) for r in range(4)]
    return sum(preds) / 4.0


# -------------------------------- Main ---------------------------------------
if __name__ == "__main__":
    key = jax.random.PRNGKey(0)
    kx, kw, kb = jax.random.split(key, 3)

    N, Cin, H, W = 2, 4, 16, 16
    Cout, K = 8, 3

    x = jax.random.normal(kx, (N, Cin, H, W), dtype=jnp.float32)
    # Deterministic synthetic Conv2d parameters (PyTorch OIHW layout).
    weight = jax.random.normal(kw, (Cout, Cin, K, K), dtype=jnp.float32) * 0.1
    bias = jax.random.normal(kb, (Cout,), dtype=jnp.float32) * 0.1

    out = jax.jit(tta_forward)(x, weight, bias)
    out = jax.block_until_ready(out)

    ref = tta_reference(x, weight, bias)
    assert out.shape == (N, Cout, H, W)
    assert jnp.allclose(out, ref, atol=1e-4, rtol=1e-4), "mismatch vs reference"

    print("KERNEL_OK")
</pallas_src>

<mosaic_0001>
module attributes {stable_mosaic.version = 11 : i64} {
  func.func @kernel(%arg0: memref<8x3200xf32, #tpu.memory_space<vmem>>, %arg1: memref<8x72xf32, #tpu.memory_space<vmem>>, %arg2: memref<8x1xf32, #tpu.memory_space<vmem>>, %arg3: memref<8x768xf32, #tpu.memory_space<vmem>>) attributes {dimension_semantics = [], scalar_prefetch = 0 : i64, scratch_operands = 0 : i64, tpu.core_type = #tpu.core_type<tc>} {
    %c0 = arith.constant 0 : index
    %c5 = arith.constant 5 : index
    %0 = vector.load %arg0[%c0, %c5] : memref<8x3200xf32, #tpu.memory_space<vmem>>, vector<8x3072xf32>
    %c0_0 = arith.constant 0 : index
    %c6 = arith.constant 6 : index
    %1 = vector.load %arg0[%c0_0, %c6] : memref<8x3200xf32, #tpu.memory_space<vmem>>, vector<8x3072xf32>
    %c0_1 = arith.constant 0 : index
    %c7 = arith.constant 7 : index
    %2 = vector.load %arg0[%c0_1, %c7] : memref<8x3200xf32, #tpu.memory_space<vmem>>, vector<8x3072xf32>
    %c0_2 = arith.constant 0 : index
    %c23 = arith.constant 23 : index
    %3 = vector.load %arg0[%c0_2, %c23] : memref<8x3200xf32, #tpu.memory_space<vmem>>, vector<8x3072xf32>
    %c0_3 = arith.constant 0 : index
    %c24 = arith.constant 24 : index
    %4 = vector.load %arg0[%c0_3, %c24] : memref<8x3200xf32, #tpu.memory_space<vmem>>, vector<8x3072xf32>
    %c0_4 = arith.constant 0 : index
    %c25 = arith.constant 25 : index
    %5 = vector.load %arg0[%c0_4, %c25] : memref<8x3200xf32, #tpu.memory_space<vmem>>, vector<8x3072xf32>
    %c0_5 = arith.constant 0 : index
    %c41 = arith.constant 41 : index
    %6 = vector.load %arg0[%c0_5, %c41] : memref<8x3200xf32, #tpu.memory_space<vmem>>, vector<8x3072xf32>
    %c0_6 = arith.constant 0 : index
    %c42 = arith.constant 42 : index
    %7 = vector.load %arg0[%c0_6, %c42] : memref<8x3200xf32, #tpu.memory_space<vmem>>, vector<8x3072xf32>
    %c0_7 = arith.constant 0 : index
    %c43 = arith.constant 43 : index
    %8 = vector.load %arg0[%c0_7, %c43] : memref<8x3200xf32, #tpu.memory_space<vmem>>, vector<8x3072xf32>
    %9 = tpu.concatenate %0, %1, %2, %3, %4, %5, %6, %7, %8 in 0 : vector<8x3072xf32>, vector<8x3072xf32>, vector<8x3072xf32>, vector<8x3072xf32>, vector<8x3072xf32>, vector<8x3072xf32>, vector<8x3072xf32>, vector<8x3072xf32>, vector<8x3072xf32> -> vector<72x3072xf32>
    %c0_8 = arith.constant 0 : index
    %c0_9 = arith.constant 0 : index
    %10 = vector.load %arg1[%c0_8, %c0_9] : memref<8x72xf32, #tpu.memory_space<vmem>>, vector<8x72xf32>
    %cst = arith.constant dense<0.000000e+00> : vector<8x3072xf32>
    %11 = tpu.matmul %10, %9, %cst {dimension_numbers = #tpu.dot_dimension_numbers<[1], [0], [0], [1], [0, 0, 1, 1], [], []>} : vector<8x72xf32>, vector<72x3072xf32>, vector<8x3072xf32> -> vector<8x3072xf32>
    %c0_10 = arith.constant 0 : index
    %c0_11 = arith.constant 0 : index
    %12 = vector.load %arg2[%c0_10, %c0_11] : memref<8x1xf32, #tpu.memory_space<vmem>>, vector<8x1xf32>
    %13 = vector.broadcast %12 : vector<8x1xf32> to vector<8x3072xf32>
    %14 = arith.addf %11, %13 : vector<8x3072xf32>
    %cst_12 = arith.constant 0.000000e+00 : f32
    %15 = vector.broadcast %cst_12 : f32 to vector<8x3072xf32>
    %16 = arith.maximumf %14, %15 : vector<8x3072xf32>
    %17 = vector.extract_strided_slice %16 {offsets = [0, 0], sizes = [8, 768], strides = [1, 1]} : vector<8x3072xf32> to vector<8x768xf32>
    %18 = vector.extract_strided_slice %16 {offsets = [0, 768], sizes = [8, 768], strides = [1, 1]} : vector<8x3072xf32> to vector<8x768xf32>
    %19 = arith.addf %17, %18 : vector<8x768xf32>
    %20 = vector.extract_strided_slice %16 {offsets = [0, 1536], sizes = [8, 768], strides = [1, 1]} : vector<8x3072xf32> to vector<8x768xf32>
    %21 = arith.addf %19, %20 : vector<8x768xf32>
    %22 = vector.extract_strided_slice %16 {offsets = [0, 2304], sizes = [8, 768], strides = [1, 1]} : vector<8x3072xf32> to vector<8x768xf32>
    %23 = arith.addf %21, %22 : vector<8x768xf32>
    %cst_13 = arith.constant 2.500000e-01 : f32
    %24 = vector.broadcast %cst_13 : f32 to vector<8x768xf32>
    %25 = arith.mulf %23, %24 : vector<8x768xf32>
    %c0_14 = arith.constant 0 : index
    %c0_15 = arith.constant 0 : index
    %26 = vector.load %arg3[%c0_14, %c0_15] : memref<8x768xf32, #tpu.memory_space<vmem>>, vector<8x768xf32>
    tpu.vector_store %arg3[%c0_14, %c0_15], %25 {strides = array<i32>} : memref<8x768xf32, #tpu.memory_space<vmem>>, vector<8x768xf32>,
    return
  }
}

</mosaic_0001>

<llo_original>
// kernel: tta_forward.1
$region0: #{tta_forward.1}
  #allocation0 [shape = 'u32[]', space=smem, size = 0x4, offset = 0x4, fixed_abs, tag = 'smem constant byte address 0x4 - core index']
  #allocation1 [shape = 'u32[144,128]{1,0:T(1,128)}', space=vmem, size = 0x12000, scoped, tag = 'internal scratch']
  %s0 = inlined_call_operand.vmem [shape: f32[8,3200], index: 0, kind: input, shape index: {}]
  %s1 = inlined_call_operand.vmem [shape: f32[8,72], index: 1, kind: input, shape index: {}]
  %s2 = inlined_call_operand.vmem [shape: f32[8,1], index: 2, kind: input, shape index: {}]
  %s3 = inlined_call_operand.vmem [shape: f32[8,768], index: 3, kind: output, shape index: {}]
  %s4 = sld [smem:[#allocation0]]
  $region22: #{tta_forward.1} parent=0
    _
  %s6 = ssub.s32 1, %s4
  %s7 = scalar_select 0, %s6, %s4
  // Predicated region
  $region2: #{tta_forward.1} parent=0 // pred_check
    _
  $region3: #{tta_forward.1} parent=0 // pred_check_branch
    %9 = sbr.rel (0) target = $region5
  $region4: #{tta_forward.1} parent=0 // pred_region
    _
  $region5: #{tta_forward.1} parent=0 // pred_fallthru
    _
  // Predicated region
  $region6: #{tta_forward.1} parent=0 // pred_check
    _
  $region7: #{tta_forward.1} parent=0 // pred_check_branch
    %11 = sbr.rel (0) target = $region9
  $region8: #{tta_forward.1} parent=0 // pred_region
    _
  $region9: #{tta_forward.1} parent=0 // pred_fallthru
    _
  // Predicated region
  $region10: #{tta_forward.1} parent=0 // pred_check
    _
  $region11: #{tta_forward.1} parent=0 // pred_check_branch
    %13 = sbr.rel (0) target = $region13
  $region12: #{tta_forward.1} parent=0 // pred_region
    _
  $region13: #{tta_forward.1} parent=0 // pred_fallthru
    _
  %v14 = vld [vmem:[%s0] sm:$0xff]
  %v15 = vld [vmem:[%s0 + $0x8] sm:$0xff]
  %v16 = vld [vmem:[%s0 + $0x10] sm:$0xff]
  %v17 = vld [vmem:[%s0 + $0x18] sm:$0xff]
  %v18 = vld [vmem:[%s0 + $0x20] sm:$0xff]
  %v19 = vld [vmem:[%s0 + $0x28] sm:$0xff]
  %v20 = vld [vmem:[%s0 + $0x30] sm:$0xff]
  %v21 = vld [vmem:[%s0 + $0x38] sm:$0xff]
  %v22 = vld [vmem:[%s0 + $0x40] sm:$0xff]
  %v23 = vld [vmem:[%s0 + $0x48] sm:$0xff]
  %v24 = vld [vmem:[%s0 + $0x50] sm:$0xff]
  %v25 = vld [vmem:[%s0 + $0x58] sm:$0xff]
  %v26 = vld [vmem:[%s0 + $0x60] sm:$0xff]
  %v27 = vld [vmem:[%s0 + $0x68] sm:$0xff]
  %v28 = vld [vmem:[%s0 + $0x70] sm:$0xff]
  %v29 = vld [vmem:[%s0 + $0x78] sm:$0xff]
  %v30 = vld [vmem:[%s0 + $0x80] sm:$0xff]
  %v31 = vld [vmem:[%s0 + $0x88] sm:$0xff]
  %v32 = vld [vmem:[%s0 + $0x90] sm:$0xff]
  %v33 = vld [vmem:[%s0 + $0x98] sm:$0xff]
  %v34 = vld [vmem:[%s0 + $0xa0] sm:$0xff]
  %v35 = vld [vmem:[%s0 + $0xa8] sm:$0xff]
  %v36 = vld [vmem:[%s0 + $0xb0] sm:$0xff]
  %v37 = vld [vmem:[%s0 + $0xb8] sm:$0xff]
  %v38 = vld [vmem:[%s0 + $0xc0] sm:$0xff]
  %64 = vrot.lane.b32.xlu0 %v14, 127
  %v65 = vpop.permute.xlu0 %64
  %66 = vrot.lane.b32.xlu0 %v15, 127
  %v67 = vpop.permute.xlu0 %66
  %68 = vrot.lane.b32.xlu0 %v16, 127
  %v69 = vpop.permute.xlu0 %68
  %70 = vrot.lane.b32.xlu0 %v17, 127
  %v71 = vpop.permute.xlu0 %70
  %72 = vrot.lane.b32.xlu0 %v18, 127
  %v73 = vpop.permute.xlu0 %72
  %74 = vrot.lane.b32.xlu0 %v19, 127
  %v75 = vpop.permute.xlu0 %74
  %76 = vrot.lane.b32.xlu0 %v20, 127
  %v77 = vpop.permute.xlu0 %76
  %78 = vrot.lane.b32.xlu0 %v21, 127
  %v79 = vpop.permute.xlu0 %78
  %80 = vrot.lane.b32.xlu0 %v22, 127
  %v81 = vpop.permute.xlu0 %80
  %82 = vrot.lane.b32.xlu0 %v23, 127
  %v83 = vpop.permute.xlu0 %82
  %84 = vrot.lane.b32.xlu0 %v24, 127
  %v85 = vpop.permute.xlu0 %84
  %86 = vrot.lane.b32.xlu0 %v25, 127
  %v87 = vpop.permute.xlu0 %86
  %88 = vrot.lane.b32.xlu0 %v26, 127
  %v89 = vpop.permute.xlu0 %88
  %90 = vrot.lane.b32.xlu0 %v27, 127
  %v91 = vpop.permute.xlu0 %90
  %92 = vrot.lane.b32.xlu0 %v28, 127
  %v93 = vpop.permute.xlu0 %92
  %94 = vrot.lane.b32.xlu0 %v29, 127
  %v95 = vpop.permute.xlu0 %94
  %96 = vrot.lane.b32.xlu0 %v30, 127
  %v97 = vpop.permute.xlu0 %96
  %98 = vrot.lane.b32.xlu0 %v31, 127
  %v99 = vpop.permute.xlu0 %98
  %100 = vrot.lane.b32.xlu0 %v32, 127
  %v101 = vpop.permute.xlu0 %100
  %102 = vrot.lane.b32.xlu0 %v33, 127
  %v103 = vpop.permute.xlu0 %102
  %104 = vrot.lane.b32.xlu0 %v34, 127
  %v105 = vpop.permute.xlu0 %104
  %106 = vrot.lane.b32.xlu0 %v35, 127
  %v107 = vpop.permute.xlu0 %106
  %108 = vrot.lane.b32.xlu0 %v36, 127
  %v109 = vpop.permute.xlu0 %108
  %110 = vrot.lane.b32.xlu0 %v37, 127
  %v111 = vpop.permute.xlu0 %110
  %112 = vrot.lane.b32.xlu0 %v38, 127
  %v113 = vpop.permute.xlu0 %112
  %vm114 = vcmask 1039360
  %v115 = vsel %vm114, %v65, %v67
  %v116 = vsel %vm114, %v67, %v69
  %v117 = vsel %vm114, %v69, %v71
  %v118 = vsel %vm114, %v71, %v73
  %v119 = vsel %vm114, %v73, %v75
  %v120 = vsel %vm114, %v75, %v77
  %v121 = vsel %vm114, %v77, %v79
  %v122 = vsel %vm114, %v79, %v81
  %v123 = vsel %vm114, %v81, %v83
  %v124 = vsel %vm114, %v83, %v85
  %v125 = vsel %vm114, %v85, %v87
  %v126 = vsel %vm114, %v87, %v89
  %v127 = vsel %vm114, %v89, %v91
  %v128 = vsel %vm114, %v91, %v93
  %v129 = vsel %vm114, %v93, %v95
  %v130 = vsel %vm114, %v95, %v97
  %v131 = vsel %vm114, %v97, %v99
  %v132 = vsel %vm114, %v99, %v101
  %v133 = vsel %vm114, %v101, %v103
  %v134 = vsel %vm114, %v103, %v105
  %v135 = vsel %vm114, %v105, %v107
  %v136 = vsel %vm114, %v107, %v109
  %v137 = vsel %vm114, %v109, %v111
  %v138 = vsel %vm114, %v111, %v113
  %139 = vrot.lane.b32.xlu0 %v14, 126
  %v140 = vpop.permute.xlu0 %139
  %141 = vrot.lane.b32.xlu0 %v15, 126
  %v142 = vpop.permute.xlu0 %141
  %143 = vrot.lane.b32.xlu0 %v16, 126
  %v144 = vpop.permute.xlu0 %143
  %145 = vrot.lane.b32.xlu0 %v17, 126
  %v146 = vpop.permute.xlu0 %145
  %147 = vrot.lane.b32.xlu0 %v18, 126
  %v148 = vpop.permute.xlu0 %147
  %149 = vrot.lane.b32.xlu0 %v19, 126
  %v150 = vpop.permute.xlu0 %149
  %151 = vrot.lane.b32.xlu0 %v20, 126
  %v152 = vpop.permute.xlu0 %151
  %153 = vrot.lane.b32.xlu0 %v21, 126
  %v154 = vpop.permute.xlu0 %153
  %155 = vrot.lane.b32.xlu0 %v22, 126
  %v156 = vpop.permute.xlu0 %155
  %157 = vrot.lane.b32.xlu0 %v23, 126
  %v158 = vpop.permute.xlu0 %157
  %159 = vrot.lane.b32.xlu0 %v24, 126
  %v160 = vpop.permute.xlu0 %159
  %161 = vrot.lane.b32.xlu0 %v25, 126
  %v162 = vpop.permute.xlu0 %161
  %163 = vrot.lane.b32.xlu0 %v26, 126
  %v164 = vpop.permute.xlu0 %163
  %165 = vrot.lane.b32.xlu0 %v27, 126
  %v166 = vpop.permute.xlu0 %165
  %167 = vrot.lane.b32.xlu0 %v28, 126
  %v168 = vpop.permute.xlu0 %167
  %169 = vrot.lane.b32.xlu0 %v29, 126
  %v170 = vpop.permute.xlu0 %169
  %171 = vrot.lane.b32.xlu0 %v30, 126
  %v172 = vpop.permute.xlu0 %171
  %173 = vrot.lane.b32.xlu0 %v31, 126
  %v174 = vpop.permute.xlu0 %173
  %175 = vrot.lane.b32.xlu0 %v32, 126
  %v176 = vpop.permute.xlu0 %175
  %177 = vrot.lane.b32.xlu0 %v33, 126
  %v178 = vpop.permute.xlu0 %177
  %179 = vrot.lane.b32.xlu0 %v34, 126
  %v180 = vpop.permute.xlu0 %179
  %181 = vrot.lane.b32.xlu0 %v35, 126
  %v182 = vpop.permute.xlu0 %181
  %183 = vrot.lane.b32.xlu0 %v36, 126
  %v184 = vpop.permute.xlu0 %183
  %185 = vrot.lane.b32.xlu0 %v37, 126
  %v186 = vpop.permute.xlu0 %185
  %187 = vrot.lane.b32.xlu0 %v38, 126
  %v188 = vpop.permute.xlu0 %187
  %vm189 = vcmask 1031168
  %v190 = vsel %vm189, %v140, %v142
  %v191 = vsel %vm189, %v142, %v144
  %v192 = vsel %vm189, %v144, %v146
  %v193 = vsel %vm189, %v146, %v148
  %v194 = vsel %vm189, %v148, %v150
  %v195 = vsel %vm189, %v150, %v152
  %v196 = vsel %vm189, %v152, %v154
  %v197 = vsel %vm189, %v154, %v156
  %v198 = vsel %vm189, %v156, %v158
  %v199 = vsel %vm189, %v158, %v160
  %v200 = vsel %vm189, %v160, %v162
  %v201 = vsel %vm189, %v162, %v164
  %v202 = vsel %vm189, %v164, %v166
  %v203 = vsel %vm189, %v166, %v168
  %v204 = vsel %vm189, %v168, %v170
  %v205 = vsel %vm189, %v170, %v172
  %v206 = vsel %vm189, %v172, %v174
  %v207 = vsel %vm189, %v174, %v176
  %v208 = vsel %vm189, %v176, %v178
  %v209 = vsel %vm189, %v178, %v180
  %v210 = vsel %vm189, %v180, %v182
  %v211 = vsel %vm189, %v182, %v184
  %v212 = vsel %vm189, %v184, %v186
  %v213 = vsel %vm189, %v186, %v188
  %214 = vrot.lane.b32.xlu0 %v14, 110
  %v215 = vpop.permute.xlu0 %214
  %216 = vrot.lane.b32.xlu0 %v15, 110
  %v217 = vpop.permute.xlu0 %216
  %218 = vrot.lane.b32.xlu0 %v16, 110
  %v219 = vpop.permute.xlu0 %218
  %220 = vrot.lane.b32.xlu0 %v17, 110
  %v221 = vpop.permute.xlu0 %220
  %222 = vrot.lane.b32.xlu0 %v18, 110
  %v223 = vpop.permute.xlu0 %222
  %224 = vrot.lane.b32.xlu0 %v19, 110
  %v225 = vpop.permute.xlu0 %224
  %226 = vrot.lane.b32.xlu0 %v20, 110
  %v227 = vpop.permute.xlu0 %226
  %228 = vrot.lane.b32.xlu0 %v21, 110
  %v229 = vpop.permute.xlu0 %228
  %230 = vrot.lane.b32.xlu0 %v22, 110
  %v231 = vpop.permute.xlu0 %230
  %232 = vrot.lane.b32.xlu0 %v23, 110
  %v233 = vpop.permute.xlu0 %232
  %234 = vrot.lane.b32.xlu0 %v24, 110
  %v235 = vpop.permute.xlu0 %234
  %236 = vrot.lane.b32.xlu0 %v25, 110
  %v237 = vpop.permute.xlu0 %236
  %238 = vrot.lane.b32.xlu0 %v26, 110
  %v239 = vpop.permute.xlu0 %238
  %240 = vrot.lane.b32.xlu0 %v27, 110
  %v241 = vpop.permute.xlu0 %240
  %242 = vrot.lane.b32.xlu0 %v28, 110
  %v243 = vpop.permute.xlu0 %242
  %244 = vrot.lane.b32.xlu0 %v29, 110
  %v245 = vpop.permute.xlu0 %244
  %246 = vrot.lane.b32.xlu0 %v30, 110
  %v247 = vpop.permute.xlu0 %246
  %248 = vrot.lane.b32.xlu0 %v31, 110
  %v249 = vpop.permute.xlu0 %248
  %250 = vrot.lane.b32.xlu0 %v32, 110
  %v251 = vpop.permute.xlu0 %250
  %252 = vrot.lane.b32.xlu0 %v33, 110
  %v253 = vpop.permute.xlu0 %252
  %254 = vrot.lane.b32.xlu0 %v34, 110
  %v255 = vpop.permute.xlu0 %254
  %256 = vrot.lane.b32.xlu0 %v35, 110
  %v257 = vpop.permute.xlu0 %256
  %258 = vrot.lane.b32.xlu0 %v36, 110
  %v259 = vpop.permute.xlu0 %258
  %260 = vrot.lane.b32.xlu0 %v37, 110
  %v261 = vpop.permute.xlu0 %260
  %262 = vrot.lane.b32.xlu0 %v38, 110
  %v263 = vpop.permute.xlu0 %262
  %vm264 = vcmask 900096
  %v265 = vsel %vm264, %v215, %v217
  %v266 = vsel %vm264, %v217, %v219
  %v267 = vsel %vm264, %v219, %v221
  %v268 = vsel %vm264, %v221, %v223
  %v269 = vsel %vm264, %v223, %v225
  %v270 = vsel %vm264, %v225, %v227
  %v271 = vsel %vm264, %v227, %v229
  %v272 = vsel %vm264, %v229, %v231
  %v273 = vsel %vm264, %v231, %v233
  %v274 = vsel %vm264, %v233, %v235
  %v275 = vsel %vm264, %v235, %v237
  %v276 = vsel %vm264, %v237, %v239
  %v277 = vsel %vm264, %v239, %v241
  %v278 = vsel %vm264, %v241, %v243
  %v279 = vsel %vm264, %v243, %v245
  %v280 = vsel %vm264, %v245, %v247
  %v281 = vsel %vm264, %v247, %v249
  %v282 = vsel %vm264, %v249, %v251
  %v283 = vsel %vm264, %v251, %v253
  %v284 = vsel %vm264, %v253, %v255
  %v285 = vsel %vm264, %v255, %v257
  %v286 = vsel %vm264, %v257, %v259
  %v287 = vsel %vm264, %v259, %v261
  %v288 = vsel %vm264, %v261, %v263
  %289 = vrot.lane.b32.xlu0 %v14, 109
  %v290 = vpop.permute.xlu0 %289
  %291 = vrot.lane.b32.xlu0 %v15, 109
  %v292 = vpop.permute.xlu0 %291
  %293 = vrot.lane.b32.xlu0 %v16, 109
  %v294 = vpop.permute.xlu0 %293
  %295 = vrot.lane.b32.xlu0 %v17, 109
  %v296 = vpop.permute.xlu0 %295
  %297 = vrot.lane.b32.xlu0 %v18, 109
  %v298 = vpop.permute.xlu0 %297
  %299 = vrot.lane.b32.xlu0 %v19, 109
  %v300 = vpop.permute.xlu0 %299
  %301 = vrot.lane.b32.xlu0 %v20, 109
  %v302 = vpop.permute.xlu0 %301
  %303 = vrot.lane.b32.xlu0 %v21, 109
  %v304 = vpop.permute.xlu0 %303
  %305 = vrot.lane.b32.xlu0 %v22, 109
  %v306 = vpop.permute.xlu0 %305
  %307 = vrot.lane.b32.xlu0 %v23, 109
  %v308 = vpop.permute.xlu0 %307
  %309 = vrot.lane.b32.xlu0 %v24, 109
  %v310 = vpop.permute.xlu0 %309
  %311 = vrot.lane.b32.xlu0 %v25, 109
  %v312 = vpop.permute.xlu0 %311
  %313 = vrot.lane.b32.xlu0 %v26, 109
  %v314 = vpop.permute.xlu0 %313
  %315 = vrot.lane.b32.xlu0 %v27, 109
  %v316 = vpop.permute.xlu0 %315
  %317 = vrot.lane.b32.xlu0 %v28, 109
  %v318 = vpop.permute.xlu0 %317
  %319 = vrot.lane.b32.xlu0 %v29, 109
  %v320 = vpop.permute.xlu0 %319
  %321 = vrot.lane.b32.xlu0 %v30, 109
  %v322 = vpop.permute.xlu0 %321
  %323 = vrot.lane.b32.xlu0 %v31, 109
  %v324 = vpop.permute.xlu0 %323
  %325 = vrot.lane.b32.xlu0 %v32, 109
  %v326 = vpop.permute.xlu0 %325
  %327 = vrot.lane.b32.xlu0 %v33, 109
  %v328 = vpop.permute.xlu0 %327
  %329 = vrot.lane.b32.xlu0 %v34, 109
  %v330 = vpop.permute.xlu0 %329
  %331 = vrot.lane.b32.xlu0 %v35, 109
  %v332 = vpop.permute.xlu0 %331
  %333 = vrot.lane.b32.xlu0 %v36, 109
  %v334 = vpop.permute.xlu0 %333
  %335 = vrot.lane.b32.xlu0 %v37, 109
  %v336 = vpop.permute.xlu0 %335
  %337 = vrot.lane.b32.xlu0 %v38, 109
  %v338 = vpop.permute.xlu0 %337
  %vm339 = vcmask 891904
  %v340 = vsel %vm339, %v290, %v292
  %v341 = vsel %vm339, %v292, %v294
  %v342 = vsel %vm339, %v294, %v296
  %v343 = vsel %vm339, %v296, %v298
  %v344 = vsel %vm339, %v298, %v300
  %v345 = vsel %vm339, %v300, %v302
  %v346 = vsel %vm339, %v302, %v304
  %v347 = vsel %vm339, %v304, %v306
  %v348 = vsel %vm339, %v306, %v308
  %v349 = vsel %vm339, %v308, %v310
  %v350 = vsel %vm339, %v310, %v312
  %v351 = vsel %vm339, %v312, %v314
  %v352 = vsel %vm339, %v314, %v316
  %v353 = vsel %vm339, %v316, %v318
  %v354 = vsel %vm339, %v318, %v320
  %v355 = vsel %vm339, %v320, %v322
  %v356 = vsel %vm339, %v322, %v324
  %v357 = vsel %vm339, %v324, %v326
  %v358 = vsel %vm339, %v326, %v328
  %v359 = vsel %vm339, %v328, %v330
  %v360 = vsel %vm339, %v330, %v332
  %v361 = vsel %vm339, %v332, %v334
  %v362 = vsel %vm339, %v334, %v336
  %v363 = vsel %vm339, %v336, %v338
  %364 = vrot.lane.b32.xlu0 %v14, 108
  %v365 = vpop.permute.xlu0 %364
  %366 = vrot.lane.b32.xlu0 %v15, 108
  %v367 = vpop.permute.xlu0 %366
  %368 = vrot.lane.b32.xlu0 %v16, 108
  %v369 = vpop.permute.xlu0 %368
  %370 = vrot.lane.b32.xlu0 %v17, 108
  %v371 = vpop.permute.xlu0 %370
  %372 = vrot.lane.b32.xlu0 %v18, 108
  %v373 = vpop.permute.xlu0 %372
  %374 = vrot.lane.b32.xlu0 %v19, 108
  %v375 = vpop.permute.xlu0 %374
  %376 = vrot.lane.b32.xlu0 %v20, 108
  %v377 = vpop.permute.xlu0 %376
  %378 = vrot.lane.b32.xlu0 %v21, 108
  %v379 = vpop.permute.xlu0 %378
  %380 = vrot.lane.b32.xlu0 %v22, 108
  %v381 = vpop.permute.xlu0 %380
  %382 = vrot.lane.b32.xlu0 %v23, 108
  %v383 = vpop.permute.xlu0 %382
  %384 = vrot.lane.b32.xlu0 %v24, 108
  %v385 = vpop.permute.xlu0 %384
  %386 = vrot.lane.b32.xlu0 %v25, 108
  %v387 = vpop.permute.xlu0 %386
  %388 = vrot.lane.b32.xlu0 %v26, 108
  %v389 = vpop.permute.xlu0 %388
  %390 = vrot.lane.b32.xlu0 %v27, 108
  %v391 = vpop.permute.xlu0 %390
  %392 = vrot.lane.b32.xlu0 %v28, 108
  %v393 = vpop.permute.xlu0 %392
  %394 = vrot.lane.b32.xlu0 %v29, 108
  %v395 = vpop.permute.xlu0 %394
  %396 = vrot.lane.b32.xlu0 %v30, 108
  %v397 = vpop.permute.xlu0 %396
  %398 = vrot.lane.b32.xlu0 %v31, 108
  %v399 = vpop.permute.xlu0 %398
  %400 = vrot.lane.b32.xlu0 %v32, 108
  %v401 = vpop.permute.xlu0 %400
  %402 = vrot.lane.b32.xlu0 %v33, 108
  %v403 = vpop.permute.xlu0 %402
  %404 = vrot.lane.b32.xlu0 %v34, 108
  %v405 = vpop.permute.xlu0 %404
  %406 = vrot.lane.b32.xlu0 %v35, 108
  %v407 = vpop.permute.xlu0 %406
  %408 = vrot.lane.b32.xlu0 %v36, 108
  %v409 = vpop.permute.xlu0 %408
  %410 = vrot.lane.b32.xlu0 %v37, 108
  %v411 = vpop.permute.xlu0 %410
  %412 = vrot.lane.b32.xlu0 %v38, 108
  %v413 = vpop.permute.xlu0 %412
  %vm414 = vcmask 883712
  %v415 = vsel %vm414, %v365, %v367
  %v416 = vsel %vm414, %v367, %v369
  %v417 = vsel %vm414, %v369, %v371
  %v418 = vsel %vm414, %v371, %v373
  %v419 = vsel %vm414, %v373, %v375
  %v420 = vsel %vm414, %v375, %v377
  %v421 = vsel %vm414, %v377, %v379
  %v422 = vsel %vm414, %v379, %v381
  %v423 = vsel %vm414, %v381, %v383
  %v424 = vsel %vm414, %v383, %v385
  %v425 = vsel %vm414, %v385, %v387
  %v426 = vsel %vm414, %v387, %v389
  %v427 = vsel %vm414, %v389, %v391
  %v428 = vsel %vm414, %v391, %v393
  %v429 = vsel %vm414, %v393, %v395
  %v430 = vsel %vm414, %v395, %v397
  %v431 = vsel %vm414, %v397, %v399
  %v432 = vsel %vm414, %v399, %v401
  %v433 = vsel %vm414, %v401, %v403
  %v434 = vsel %vm414, %v403, %v405
  %v435 = vsel %vm414, %v405, %v407
  %v436 = vsel %vm414, %v407, %v409
  %v437 = vsel %vm414, %v409, %v411
  %v438 = vsel %vm414, %v411, %v413
  %439 = vrot.lane.b32.xlu0 %v14, 92
  %v440 = vpop.permute.xlu0 %439
  %441 = vrot.lane.b32.xlu0 %v15, 92
  %v442 = vpop.permute.xlu0 %441
  %443 = vrot.lane.b32.xlu0 %v16, 92
  %v444 = vpop.permute.xlu0 %443
  %445 = vrot.lane.b32.xlu0 %v17, 92
  %v446 = vpop.permute.xlu0 %445
  %447 = vrot.lane.b32.xlu0 %v18, 92
  %v448 = vpop.permute.xlu0 %447
  %449 = vrot.lane.b32.xlu0 %v19, 92
  %v450 = vpop.permute.xlu0 %449
  %451 = vrot.lane.b32.xlu0 %v20, 92
  %v452 = vpop.permute.xlu0 %451
  %453 = vrot.lane.b32.xlu0 %v21, 92
  %v454 = vpop.permute.xlu0 %453
  %455 = vrot.lane.b32.xlu0 %v22, 92
  %v456 = vpop.permute.xlu0 %455
  %457 = vrot.lane.b32.xlu0 %v23, 92
  %v458 = vpop.permute.xlu0 %457
  %459 = vrot.lane.b32.xlu0 %v24, 92
  %v460 = vpop.permute.xlu0 %459
  %461 = vrot.lane.b32.xlu0 %v25, 92
  %v462 = vpop.permute.xlu0 %461
  %463 = vrot.lane.b32.xlu0 %v26, 92
  %v464 = vpop.permute.xlu0 %463
  %465 = vrot.lane.b32.xlu0 %v27, 92
  %v466 = vpop.permute.xlu0 %465
  %467 = vrot.lane.b32.xlu0 %v28, 92
  %v468 = vpop.permute.xlu0 %467
  %469 = vrot.lane.b32.xlu0 %v29, 92
  %v470 = vpop.permute.xlu0 %469
  %471 = vrot.lane.b32.xlu0 %v30, 92
  %v472 = vpop.permute.xlu0 %471
  %473 = vrot.lane.b32.xlu0 %v31, 92
  %v474 = vpop.permute.xlu0 %473
  %475 = vrot.lane.b32.xlu0 %v32, 92
  %v476 = vpop.permute.xlu0 %475
  %477 = vrot.lane.b32.xlu0 %v33, 92
  %v478 = vpop.permute.xlu0 %477
  %479 = vrot.lane.b32.xlu0 %v34, 92
  %v480 = vpop.permute.xlu0 %479
  %481 = vrot.lane.b32.xlu0 %v35, 92
  %v482 = vpop.permute.xlu0 %481
  %483 = vrot.lane.b32.xlu0 %v36, 92
  %v484 = vpop.permute.xlu0 %483
  %485 = vrot.lane.b32.xlu0 %v37, 92
  %v486 = vpop.permute.xlu0 %485
  %487 = vrot.lane.b32.xlu0 %v38, 92
  %v488 = vpop.permute.xlu0 %487
  %vm489 = vcmask 752640
  %v490 = vsel %vm489, %v440, %v442
  %v491 = vsel %vm489, %v442, %v444
  %v492 = vsel %vm489, %v444, %v446
  %v493 = vsel %vm489, %v446, %v448
  %v494 = vsel %vm489, %v448, %v450
  %v495 = vsel %vm489, %v450, %v452
  %v496 = vsel %vm489, %v452, %v454
  %v497 = vsel %vm489, %v454, %v456
  %v498 = vsel %vm489, %v456, %v458
  %v499 = vsel %vm489, %v458, %v460
  %v500 = vsel %vm489, %v460, %v462
  %v501 = vsel %vm489, %v462, %v464
  %v502 = vsel %vm489, %v464, %v466
  %v503 = vsel %vm489, %v466, %v468
  %v504 = vsel %vm489, %v468, %v470
  %v505 = vsel %vm489, %v470, %v472
  %v506 = vsel %vm489, %v472, %v474
  %v507 = vsel %vm489, %v474, %v476
  %v508 = vsel %vm489, %v476, %v478
  %v509 = vsel %vm489, %v478, %v480
  %v510 = vsel %vm489, %v480, %v482
  %v511 = vsel %vm489, %v482, %v484
  %v512 = vsel %vm489, %v484, %v486
  %v513 = vsel %vm489, %v486, %v488
  %514 = vrot.lane.b32.xlu0 %v14, 91
  %v515 = vpop.permute.xlu0 %514
  %516 = vrot.lane.b32.xlu0 %v15, 91
  %v517 = vpop.permute.xlu0 %516
  %518 = vrot.lane.b32.xlu0 %v16, 91
  %v519 = vpop.permute.xlu0 %518
  %520 = vrot.lane.b32.xlu0 %v17, 91
  %v521 = vpop.permute.xlu0 %520
  %522 = vrot.lane.b32.xlu0 %v18, 91
  %v523 = vpop.permute.xlu0 %522
  %524 = vrot.lane.b32.xlu0 %v19, 91
  %v525 = vpop.permute.xlu0 %524
  %526 = vrot.lane.b32.xlu0 %v20, 91
  %v527 = vpop.permute.xlu0 %526
  %528 = vrot.lane.b32.xlu0 %v21, 91
  %v529 = vpop.permute.xlu0 %528
  %530 = vrot.lane.b32.xlu0 %v22, 91
  %v531 = vpop.permute.xlu0 %530
  %532 = vrot.lane.b32.xlu0 %v23, 91
  %v533 = vpop.permute.xlu0 %532
  %534 = vrot.lane.b32.xlu0 %v24, 91
  %v535 = vpop.permute.xlu0 %534
  %536 = vrot.lane.b32.xlu0 %v25, 91
  %v537 = vpop.permute.xlu0 %536
  %538 = vrot.lane.b32.xlu0 %v26, 91
  %v539 = vpop.permute.xlu0 %538
  %540 = vrot.lane.b32.xlu0 %v27, 91
  %v541 = vpop.permute.xlu0 %540
  %542 = vrot.lane.b32.xlu0 %v28, 91
  %v543 = vpop.permute.xlu0 %542
  %544 = vrot.lane.b32.xlu0 %v29, 91
  %v545 = vpop.permute.xlu0 %544
  %546 = vrot.lane.b32.xlu0 %v30, 91
  %v547 = vpop.permute.xlu0 %546
  %548 = vrot.lane.b32.xlu0 %v31, 91
  %v549 = vpop.permute.xlu0 %548
  %550 = vrot.lane.b32.xlu0 %v32, 91
  %v551 = vpop.permute.xlu0 %550
  %552 = vrot.lane.b32.xlu0 %v33, 91
  %v553 = vpop.permute.xlu0 %552
  %554 = vrot.lane.b32.xlu0 %v34, 91
  %v555 = vpop.permute.xlu0 %554
  %556 = vrot.lane.b32.xlu0 %v35, 91
  %v557 = vpop.permute.xlu0 %556
  %558 = vrot.lane.b32.xlu0 %v36, 91
  %v559 = vpop.permute.xlu0 %558
  %560 = vrot.lane.b32.xlu0 %v37, 91
  %v561 = vpop.permute.xlu0 %560
  %562 = vrot.lane.b32.xlu0 %v38, 91
  %v563 = vpop.permute.xlu0 %562
  %vm564 = vcmask 744448
  %v565 = vsel %vm564, %v515, %v517
  %v566 = vsel %vm564, %v517, %v519
  %v567 = vsel %vm564, %v519, %v521
  %v568 = vsel %vm564, %v521, %v523
  %v569 = vsel %vm564, %v523, %v525
  %v570 = vsel %vm564, %v525, %v527
  %v571 = vsel %vm564, %v527, %v529
  %v572 = vsel %vm564, %v529, %v531
  %v573 = vsel %vm564, %v531, %v533
  %v574 = vsel %vm564, %v533, %v535
  %v575 = vsel %vm564, %v535, %v537
  %v576 = vsel %vm564, %v537, %v539
  %v577 = vsel %vm564, %v539, %v541
  %v578 = vsel %vm564, %v541, %v543
  %v579 = vsel %vm564, %v543, %v545
  %v580 = vsel %vm564, %v545, %v547
  %v581 = vsel %vm564, %v547, %v549
  %v582 = vsel %vm564, %v549, %v551
  %v583 = vsel %vm564, %v551, %v553
  %v584 = vsel %vm564, %v553, %v555
  %v585 = vsel %vm564, %v555, %v557
  %v586 = vsel %vm564, %v557, %v559
  %v587 = vsel %vm564, %v559, %v561
  %v588 = vsel %vm564, %v561, %v563
  %589 = vrot.lane.b32.xlu0 %v14, 90
  %v590 = vpop.permute.xlu0 %589
  %591 = vrot.lane.b32.xlu0 %v15, 90
  %v592 = vpop.permute.xlu0 %591
  %593 = vrot.lane.b32.xlu0 %v16, 90
  %v594 = vpop.permute.xlu0 %593
  %595 = vrot.lane.b32.xlu0 %v17, 90
  %v596 = vpop.permute.xlu0 %595
  %597 = vrot.lane.b32.xlu0 %v18, 90
  %v598 = vpop.permute.xlu0 %597
  %599 = vrot.lane.b32.xlu0 %v19, 90
  %v600 = vpop.permute.xlu0 %599
  %601 = vrot.lane.b32.xlu0 %v20, 90
  %v602 = vpop.permute.xlu0 %601
  %603 = vrot.lane.b32.xlu0 %v21, 90
  %v604 = vpop.permute.xlu0 %603
  %605 = vrot.lane.b32.xlu0 %v22, 90
  %v606 = vpop.permute.xlu0 %605
  %607 = vrot.lane.b32.xlu0 %v23, 90
  %v608 = vpop.permute.xlu0 %607
  %609 = vrot.lane.b32.xlu0 %v24, 90
  %v610 = vpop.permute.xlu0 %609
  %611 = vrot.lane.b32.xlu0 %v25, 90
  %v612 = vpop.permute.xlu0 %611
  %613 = vrot.lane.b32.xlu0 %v26, 90
  %v614 = vpop.permute.xlu0 %613
  %615 = vrot.lane.b32.xlu0 %v27, 90
  %v616 = vpop.permute.xlu0 %615
  %617 = vrot.lane.b32.xlu0 %v28, 90
  %v618 = vpop.permute.xlu0 %617
  %619 = vrot.lane.b32.xlu0 %v29, 90
  %v620 = vpop.permute.xlu0 %619
  %621 = vrot.lane.b32.xlu0 %v30, 90
  %v622 = vpop.permute.xlu0 %621
  %623 = vrot.lane.b32.xlu0 %v31, 90
  %v624 = vpop.permute.xlu0 %623
  %625 = vrot.lane.b32.xlu0 %v32, 90
  %v626 = vpop.permute.xlu0 %625
  %627 = vrot.lane.b32.xlu0 %v33, 90
  %v628 = vpop.permute.xlu0 %627
  %629 = vrot.lane.b32.xlu0 %v34, 90
  %v630 = vpop.permute.xlu0 %629
  %631 = vrot.lane.b32.xlu0 %v35, 90
  %v632 = vpop.permute.xlu0 %631
  %633 = vrot.lane.b32.xlu0 %v36, 90
  %v634 = vpop.permute.xlu0 %633
  %635 = vrot.lane.b32.xlu0 %v37, 90
  %v636 = vpop.permute.xlu0 %635
  %637 = vrot.lane.b32.xlu0 %v38, 90
  %v638 = vpop.permute.xlu0 %637
  %vm639 = vcmask 736256
  %v640 = vsel %vm639, %v590, %v592
  %v641 = vsel %vm639, %v592, %v594
  %v642 = vsel %vm639, %v594, %v596
  %v643 = vsel %vm639, %v596, %v598
  %v644 = vsel %vm639, %v598, %v600
  %v645 = vsel %vm639, %v600, %v602
  %v646 = vsel %vm639, %v602, %v604
  %v647 = vsel %vm639, %v604, %v606
  %v648 = vsel %vm639, %v606, %v608
  %v649 = vsel %vm639, %v608, %v610
  %v650 = vsel %vm639, %v610, %v612
  %v651 = vsel %vm639, %v612, %v614
  %v652 = vsel %vm639, %v614, %v616
  %v653 = vsel %vm639, %v616, %v618
  %v654 = vsel %vm639, %v618, %v620
  %v655 = vsel %vm639, %v620, %v622
  %v656 = vsel %vm639, %v622, %v624
  %v657 = vsel %vm639, %v624, %v626
  %v658 = vsel %vm639, %v626, %v628
  %v659 = vsel %vm639, %v628, %v630
  %v660 = vsel %vm639, %v630, %v632
  %v661 = vsel %vm639, %v632, %v634
  %v662 = vsel %vm639, %v634, %v636
  %v663 = vsel %vm639, %v636, %v638
  %v664 = vld [vmem:[%s1] sm:$0xff]
  %v665 = vld [vmem:[%s2] sm:$0xff]
  %667 = vset.pattern.permute.xlu0 0
  %668 = vperm.xlu0 %667, %v665
  %v669 = vpop.permute.xlu0 %668
  %671 = vrot.lane.b32.xlu0 %v14, 123
  %v672 = vpop.permute.xlu0 %671
  %673 = vrot.lane.b32.xlu0 %v15, 123
  %v674 = vpop.permute.xlu0 %673
  %675 = vrot.lane.b32.xlu0 %v16, 123
  %v676 = vpop.permute.xlu0 %675
  %677 = vrot.lane.b32.xlu0 %v17, 123
  %v678 = vpop.permute.xlu0 %677
  %679 = vrot.lane.b32.xlu0 %v18, 123
  %v680 = vpop.permute.xlu0 %679
  %681 = vrot.lane.b32.xlu0 %v19, 123
  %v682 = vpop.permute.xlu0 %681
  %683 = vrot.lane.b32.xlu0 %v20, 123
  %v684 = vpop.permute.xlu0 %683
  %685 = vrot.lane.b32.xlu0 %v21, 123
  %v686 = vpop.permute.xlu0 %685
  %687 = vrot.lane.b32.xlu0 %v22, 123
  %v688 = vpop.permute.xlu0 %687
  %689 = vrot.lane.b32.xlu0 %v23, 123
  %v690 = vpop.permute.xlu0 %689
  %691 = vrot.lane.b32.xlu0 %v24, 123
  %v692 = vpop.permute.xlu0 %691
  %693 = vrot.lane.b32.xlu0 %v25, 123
  %v694 = vpop.permute.xlu0 %693
  %695 = vrot.lane.b32.xlu0 %v26, 123
  %v696 = vpop.permute.xlu0 %695
  %697 = vrot.lane.b32.xlu0 %v27, 123
  %v698 = vpop.permute.xlu0 %697
  %699 = vrot.lane.b32.xlu0 %v28, 123
  %v700 = vpop.permute.xlu0 %699
  %701 = vrot.lane.b32.xlu0 %v29, 123
  %v702 = vpop.permute.xlu0 %701
  %703 = vrot.lane.b32.xlu0 %v30, 123
  %v704 = vpop.permute.xlu0 %703
  %705 = vrot.lane.b32.xlu0 %v31, 123
  %v706 = vpop.permute.xlu0 %705
  %707 = vrot.lane.b32.xlu0 %v32, 123
  %v708 = vpop.permute.xlu0 %707
  %709 = vrot.lane.b32.xlu0 %v33, 123
  %v710 = vpop.permute.xlu0 %709
  %711 = vrot.lane.b32.xlu0 %v34, 123
  %v712 = vpop.permute.xlu0 %711
  %713 = vrot.lane.b32.xlu0 %v35, 123
  %v714 = vpop.permute.xlu0 %713
  %715 = vrot.lane.b32.xlu0 %v36, 123
  %v716 = vpop.permute.xlu0 %715
  %717 = vrot.lane.b32.xlu0 %v37, 123
  %v718 = vpop.permute.xlu0 %717
  %719 = vrot.lane.b32.xlu0 %v38, 123
  %v720 = vpop.permute.xlu0 %719
  %721 = vrot.lane.b32.xlu0 %v115, 123
  %v722 = vpop.permute.xlu0 %721
  %723 = vrot.lane.b32.xlu0 %v116, 123
  %v724 = vpop.permute.xlu0 %723
  %725 = vrot.lane.b32.xlu0 %v117, 123
  %v726 = vpop.permute.xlu0 %725
  %727 = vrot.lane.b32.xlu0 %v118, 123
  %v728 = vpop.permute.xlu0 %727
  %729 = vrot.lane.b32.xlu0 %v119, 123
  %v730 = vpop.permute.xlu0 %729
  %731 = vrot.lane.b32.xlu0 %v120, 123
  %v732 = vpop.permute.xlu0 %731
  %733 = vrot.lane.b32.xlu0 %v121, 123
  %v734 = vpop.permute.xlu0 %733
  %735 = vrot.lane.b32.xlu0 %v122, 123
  %v736 = vpop.permute.xlu0 %735
  %737 = vrot.lane.b32.xlu0 %v123, 123
  %v738 = vpop.permute.xlu0 %737
  %739 = vrot.lane.b32.xlu0 %v124, 123
  %v740 = vpop.permute.xlu0 %739
  %741 = vrot.lane.b32.xlu0 %v125, 123
  %v742 = vpop.permute.xlu0 %741
  %743 = vrot.lane.b32.xlu0 %v126, 123
  %v744 = vpop.permute.xlu0 %743
  %745 = vrot.lane.b32.xlu0 %v127, 123
  %v746 = vpop.permute.xlu0 %745
  %747 = vrot.lane.b32.xlu0 %v128, 123
  %v748 = vpop.permute.xlu0 %747
  %749 = vrot.lane.b32.xlu0 %v129, 123
  %v750 = vpop.permute.xlu0 %749
  %751 = vrot.lane.b32.xlu0 %v130, 123
  %v752 = vpop.permute.xlu0 %751
  %753 = vrot.lane.b32.xlu0 %v131, 123
  %v754 = vpop.permute.xlu0 %753
  %755 = vrot.lane.b32.xlu0 %v132, 123
  %v756 = vpop.permute.xlu0 %755
  %757 = vrot.lane.b32.xlu0 %v133, 123
  %v758 = vpop.permute.xlu0 %757
  %759 = vrot.lane.b32.xlu0 %v134, 123
  %v760 = vpop.permute.xlu0 %759
  %761 = vrot.lane.b32.xlu0 %v135, 123
  %v762 = vpop.permute.xlu0 %761
  %763 = vrot.lane.b32.xlu0 %v136, 123
  %v764 = vpop.permute.xlu0 %763
  %765 = vrot.lane.b32.xlu0 %v137, 123
  %v766 = vpop.permute.xlu0 %765
  %767 = vrot.lane.b32.xlu0 %v138, 123
  %v768 = vpop.permute.xlu0 %767
  %769 = vrot.lane.b32.xlu0 %v113, 123
  %v770 = vpop.permute.xlu0 %769
  %771 = vrot.lane.b32.xlu0 %v190, 123
  %v772 = vpop.permute.xlu0 %771
  %773 = vrot.lane.b32.xlu0 %v191, 123
  %v774 = vpop.permute.xlu0 %773
  %775 = vrot.lane.b32.xlu0 %v192, 123
  %v776 = vpop.permute.xlu0 %775
  %777 = vrot.lane.b32.xlu0 %v193, 123
  %v778 = vpop.permute.xlu0 %777
  %779 = vrot.lane.b32.xlu0 %v194, 123
  %v780 = vpop.permute.xlu0 %779
  %781 = vrot.lane.b32.xlu0 %v195, 123
  %v782 = vpop.permute.xlu0 %781
  %783 = vrot.lane.b32.xlu0 %v196, 123
  %v784 = vpop.permute.xlu0 %783
  %785 = vrot.lane.b32.xlu0 %v197, 123
  %v786 = vpop.permute.xlu0 %785
  %787 = vrot.lane.b32.xlu0 %v198, 123
  %v788 = vpop.permute.xlu0 %787
  %789 = vrot.lane.b32.xlu0 %v199, 123
  %v790 = vpop.permute.xlu0 %789
  %791 = vrot.lane.b32.xlu0 %v200, 123
  %v792 = vpop.permute.xlu0 %791
  %793 = vrot.lane.b32.xlu0 %v201, 123
  %v794 = vpop.permute.xlu0 %793
  %795 = vrot.lane.b32.xlu0 %v202, 123
  %v796 = vpop.permute.xlu0 %795
  %797 = vrot.lane.b32.xlu0 %v203, 123
  %v798 = vpop.permute.xlu0 %797
  %799 = vrot.lane.b32.xlu0 %v204, 123
  %v800 = vpop.permute.xlu0 %799
  %801 = vrot.lane.b32.xlu0 %v205, 123
  %v802 = vpop.permute.xlu0 %801
  %803 = vrot.lane.b32.xlu0 %v206, 123
  %v804 = vpop.permute.xlu0 %803
  %805 = vrot.lane.b32.xlu0 %v207, 123
  %v806 = vpop.permute.xlu0 %805
  %807 = vrot.lane.b32.xlu0 %v208, 123
  %v808 = vpop.permute.xlu0 %807
  %809 = vrot.lane.b32.xlu0 %v209, 123
  %v810 = vpop.permute.xlu0 %809
  %811 = vrot.lane.b32.xlu0 %v210, 123
  %v812 = vpop.permute.xlu0 %811
  %813 = vrot.lane.b32.xlu0 %v211, 123
  %v814 = vpop.permute.xlu0 %813
  %815 = vrot.lane.b32.xlu0 %v212, 123
  %v816 = vpop.permute.xlu0 %815
  %817 = vrot.lane.b32.xlu0 %v213, 123
  %v818 = vpop.permute.xlu0 %817
  %819 = vrot.lane.b32.xlu0 %v188, 123
  %v820 = vpop.permute.xlu0 %819
  %821 = vrot.lane.b32.xlu0 %v265, 123
  %v822 = vpop.permute.xlu0 %821
  %823 = vrot.lane.b32.xlu0 %v266, 123
  %v824 = vpop.permute.xlu0 %823
  %825 = vrot.lane.b32.xlu0 %v267, 123
  %v826 = vpop.permute.xlu0 %825
  %827 = vrot.lane.b32.xlu0 %v268, 123
  %v828 = vpop.permute.xlu0 %827
  %829 = vrot.lane.b32.xlu0 %v269, 123
  %v830 = vpop.permute.xlu0 %829
  %831 = vrot.lane.b32.xlu0 %v270, 123
  %v832 = vpop.permute.xlu0 %831
  %833 = vrot.lane.b32.xlu0 %v271, 123
  %v834 = vpop.permute.xlu0 %833
  %835 = vrot.lane.b32.xlu0 %v272, 123
  %v836 = vpop.permute.xlu0 %835
  %837 = vrot.lane.b32.xlu0 %v273, 123
  %v838 = vpop.permute.xlu0 %837
  %839 = vrot.lane.b32.xlu0 %v274, 123
  %v840 = vpop.permute.xlu0 %839
  %841 = vrot.lane.b32.xlu0 %v275, 123
  %v842 = vpop.permute.xlu0 %841
  %843 = vrot.lane.b32.xlu0 %v276, 123
  %v844 = vpop.permute.xlu0 %843
  %845 = vrot.lane.b32.xlu0 %v277, 123
  %v846 = vpop.permute.xlu0 %845
  %847 = vrot.lane.b32.xlu0 %v278, 123
  %v848 = vpop.permute.xlu0 %847
  %849 = vrot.lane.b32.xlu0 %v279, 123
  %v850 = vpop.permute.xlu0 %849
  %851 = vrot.lane.b32.xlu0 %v280, 123
  %v852 = vpop.permute.xlu0 %851
  %853 = vrot.lane.b32.xlu0 %v281, 123
  %v854 = vpop.permute.xlu0 %853
  %855 = vrot.lane.b32.xlu0 %v282, 123
  %v856 = vpop.permute.xlu0 %855
  %857 = vrot.lane.b32.xlu0 %v283, 123
  %v858 = vpop.permute.xlu0 %857
  %859 = vrot.lane.b32.xlu0 %v284, 123
  %v860 = vpop.permute.xlu0 %859
  %861 = vrot.lane.b32.xlu0 %v285, 123
  %v862 = vpop.permute.xlu0 %861
  %863 = vrot.lane.b32.xlu0 %v286, 123
  %v864 = vpop.permute.xlu0 %863
  %865 = vrot.lane.b32.xlu0 %v287, 123
  %v866 = vpop.permute.xlu0 %865
  %867 = vrot.lane.b32.xlu0 %v288, 123
  %v868 = vpop.permute.xlu0 %867
  %869 = vrot.lane.b32.xlu0 %v263, 123
  %v870 = vpop.permute.xlu0 %869
  %871 = vrot.lane.b32.xlu0 %v340, 123
  %v872 = vpop.permute.xlu0 %871
  %873 = vrot.lane.b32.xlu0 %v341, 123
  %v874 = vpop.permute.xlu0 %873
  %875 = vrot.lane.b32.xlu0 %v342, 123
  %v876 = vpop.permute.xlu0 %875
  %877 = vrot.lane.b32.xlu0 %v343, 123
  %v878 = vpop.permute.xlu0 %877
  %879 = vrot.lane.b32.xlu0 %v344, 123
  %v880 = vpop.permute.xlu0 %879
  %881 = vrot.lane.b32.xlu0 %v345, 123
  %v882 = vpop.permute.xlu0 %881
  %883 = vrot.lane.b32.xlu0 %v346, 123
  %v884 = vpop.permute.xlu0 %883
  %885 = vrot.lane.b32.xlu0 %v347, 123
  %v886 = vpop.permute.xlu0 %885
  %887 = vrot.lane.b32.xlu0 %v348, 123
  %v888 = vpop.permute.xlu0 %887
  %889 = vrot.lane.b32.xlu0 %v349, 123
  %v890 = vpop.permute.xlu0 %889
  %891 = vrot.lane.b32.xlu0 %v350, 123
  %v892 = vpop.permute.xlu0 %891
  %893 = vrot.lane.b32.xlu0 %v351, 123
  %v894 = vpop.permute.xlu0 %893
  %895 = vrot.lane.b32.xlu0 %v352, 123
  %v896 = vpop.permute.xlu0 %895
  %897 = vrot.lane.b32.xlu0 %v353, 123
  %v898 = vpop.permute.xlu0 %897
  %899 = vrot.lane.b32.xlu0 %v354, 123
  %v900 = vpop.permute.xlu0 %899
  %901 = vrot.lane.b32.xlu0 %v355, 123
  %v902 = vpop.permute.xlu0 %901
  %903 = vrot.lane.b32.xlu0 %v356, 123
  %v904 = vpop.permute.xlu0 %903
  %905 = vrot.lane.b32.xlu0 %v357, 123
  %v906 = vpop.permute.xlu0 %905
  %907 = vrot.lane.b32.xlu0 %v358, 123
  %v908 = vpop.permute.xlu0 %907
  %909 = vrot.lane.b32.xlu0 %v359, 123
  %v910 = vpop.permute.xlu0 %909
  %911 = vrot.lane.b32.xlu0 %v360, 123
  %v912 = vpop.permute.xlu0 %911
  %913 = vrot.lane.b32.xlu0 %v361, 123
  %v914 = vpop.permute.xlu0 %913
  %915 = vrot.lane.b32.xlu0 %v362, 123
  %v916 = vpop.permute.xlu0 %915
  %917 = vrot.lane.b32.xlu0 %v363, 123
  %v918 = vpop.permute.xlu0 %917
  %919 = vrot.lane.b32.xlu0 %v338, 123
  %v920 = vpop.permute.xlu0 %919
  %921 = vrot.lane.b32.xlu0 %v415, 123
  %v922 = vpop.permute.xlu0 %921
  %923 = vrot.lane.b32.xlu0 %v416, 123
  %v924 = vpop.permute.xlu0 %923
  %925 = vrot.lane.b32.xlu0 %v417, 123
  %v926 = vpop.permute.xlu0 %925
  %927 = vrot.lane.b32.xlu0 %v418, 123
  %v928 = vpop.permute.xlu0 %927
  %929 = vrot.lane.b32.xlu0 %v419, 123
  %v930 = vpop.permute.xlu0 %929
  %931 = vrot.lane.b32.xlu0 %v420, 123
  %v932 = vpop.permute.xlu0 %931
  %933 = vrot.lane.b32.xlu0 %v421, 123
  %v934 = vpop.permute.xlu0 %933
  %935 = vrot.lane.b32.xlu0 %v422, 123
  %v936 = vpop.permute.xlu0 %935
  %937 = vrot.lane.b32.xlu0 %v423, 123
  %v938 = vpop.permute.xlu0 %937
  %939 = vrot.lane.b32.xlu0 %v424, 123
  %v940 = vpop.permute.xlu0 %939
  %941 = vrot.lane.b32.xlu0 %v425, 123
  %v942 = vpop.permute.xlu0 %941
  %943 = vrot.lane.b32.xlu0 %v426, 123
  %v944 = vpop.permute.xlu0 %943
  %945 = vrot.lane.b32.xlu0 %v427, 123
  %v946 = vpop.permute.xlu0 %945
  %947 = vrot.lane.b32.xlu0 %v428, 123
  %v948 = vpop.permute.xlu0 %947
  %949 = vrot.lane.b32.xlu0 %v429, 123
  %v950 = vpop.permute.xlu0 %949
  %951 = vrot.lane.b32.xlu0 %v430, 123
  %v952 = vpop.permute.xlu0 %951
  %953 = vrot.lane.b32.xlu0 %v431, 123
  %v954 = vpop.permute.xlu0 %953
  %955 = vrot.lane.b32.xlu0 %v432, 123
  %v956 = vpop.permute.xlu0 %955
  %957 = vrot.lane.b32.xlu0 %v433, 123
  %v958 = vpop.permute.xlu0 %957
  %959 = vrot.lane.b32.xlu0 %v434, 123
  %v960 = vpop.permute.xlu0 %959
  %961 = vrot.lane.b32.xlu0 %v435, 123
  %v962 = vpop.permute.xlu0 %961
  %963 = vrot.lane.b32.xlu0 %v436, 123
  %v964 = vpop.permute.xlu0 %963
  %965 = vrot.lane.b32.xlu0 %v437, 123
  %v966 = vpop.permute.xlu0 %965
  %967 = vrot.lane.b32.xlu0 %v438, 123
  %v968 = vpop.permute.xlu0 %967
  %969 = vrot.lane.b32.xlu0 %v413, 123
  %v970 = vpop.permute.xlu0 %969
  %971 = vrot.lane.b32.xlu0 %v490, 123
  %v972 = vpop.permute.xlu0 %971
  %973 = vrot.lane.b32.xlu0 %v491, 123
  %v974 = vpop.permute.xlu0 %973
  %975 = vrot.lane.b32.xlu0 %v492, 123
  %v976 = vpop.permute.xlu0 %975
  %977 = vrot.lane.b32.xlu0 %v493, 123
  %v978 = vpop.permute.xlu0 %977
  %979 = vrot.lane.b32.xlu0 %v494, 123
  %v980 = vpop.permute.xlu0 %979
  %981 = vrot.lane.b32.xlu0 %v495, 123
  %v982 = vpop.permute.xlu0 %981
  %983 = vrot.lane.b32.xlu0 %v496, 123
  %v984 = vpop.permute.xlu0 %983
  %985 = vrot.lane.b32.xlu0 %v497, 123
  %v986 = vpop.permute.xlu0 %985
  %987 = vrot.lane.b32.xlu0 %v498, 123
  %v988 = vpop.permute.xlu0 %987
  %989 = vrot.lane.b32.xlu0 %v499, 123
  %v990 = vpop.permute.xlu0 %989
  %991 = vrot.lane.b32.xlu0 %v500, 123
  %v992 = vpop.permute.xlu0 %991
  %993 = vrot.lane.b32.xlu0 %v501, 123
  %v994 = vpop.permute.xlu0 %993
  %995 = vrot.lane.b32.xlu0 %v502, 123
  %v996 = vpop.permute.xlu0 %995
  %997 = vrot.lane.b32.xlu0 %v503, 123
  %v998 = vpop.permute.xlu0 %997
  %999 = vrot.lane.b32.xlu0 %v504, 123
  %v1000 = vpop.permute.xlu0 %999
  %1001 = vrot.lane.b32.xlu0 %v505, 123
  %v1002 = vpop.permute.xlu0 %1001
  %1003 = vrot.lane.b32.xlu0 %v506, 123
  %v1004 = vpop.permute.xlu0 %1003
  %1005 = vrot.lane.b32.xlu0 %v507, 123
  %v1006 = vpop.permute.xlu0 %1005
  %1007 = vrot.lane.b32.xlu0 %v508, 123
  %v1008 = vpop.permute.xlu0 %1007
  %1009 = vrot.lane.b32.xlu0 %v509, 123
  %v1010 = vpop.permute.xlu0 %1009
  %1011 = vrot.lane.b32.xlu0 %v510, 123
  %v1012 = vpop.permute.xlu0 %1011
  %1013 = vrot.lane.b32.xlu0 %v511, 123
  %v1014 = vpop.permute.xlu0 %1013
  %1015 = vrot.lane.b32.xlu0 %v512, 123
  %v1016 = vpop.permute.xlu0 %1015
  %1017 = vrot.lane.b32.xlu0 %v513, 123
  %v1018 = vpop.permute.xlu0 %1017
  %1019 = vrot.lane.b32.xlu0 %v488, 123
  %v1020 = vpop.permute.xlu0 %1019
  %1021 = vrot.lane.b32.xlu0 %v565, 123
  %v1022 = vpop.permute.xlu0 %1021
  %1023 = vrot.lane.b32.xlu0 %v566, 123
  %v1024 = vpop.permute.xlu0 %1023
  %1025 = vrot.lane.b32.xlu0 %v567, 123
  %v1026 = vpop.permute.xlu0 %1025
  %1027 = vrot.lane.b32.xlu0 %v568, 123
  %v1028 = vpop.permute.xlu0 %1027
  %1029 = vrot.lane.b32.xlu0 %v569, 123
  %v1030 = vpop.permute.xlu0 %1029
  %1031 = vrot.lane.b32.xlu0 %v570, 123
  %v1032 = vpop.permute.xlu0 %1031
  %1033 = vrot.lane.b32.xlu0 %v571, 123
  %v1034 = vpop.permute.xlu0 %1033
  %1035 = vrot.lane.b32.xlu0 %v572, 123
  %v1036 = vpop.permute.xlu0 %1035
  %1037 = vrot.lane.b32.xlu0 %v573, 123
  %v1038 = vpop.permute.xlu0 %1037
  %1039 = vrot.lane.b32.xlu0 %v574, 123
  %v1040 = vpop.permute.xlu0 %1039
  %1041 = vrot.lane.b32.xlu0 %v575, 123
  %v1042 = vpop.permute.xlu0 %1041
  %1043 = vrot.lane.b32.xlu0 %v576, 123
  %v1044 = vpop.permute.xlu0 %1043
  %1045 = vrot.lane.b32.xlu0 %v577, 123
  %v1046 = vpop.permute.xlu0 %1045
  %1047 = vrot.lane.b32.xlu0 %v578, 123
  %v1048 = vpop.permute.xlu0 %1047
  %1049 = vrot.lane.b32.xlu0 %v579, 123
  %v1050 = vpop.permute.xlu0 %1049
  %1051 = vrot.lane.b32.xlu0 %v580, 123
  %v1052 = vpop.permute.xlu0 %1051
  %1053 = vrot.lane.b32.xlu0 %v581, 123
  %v1054 = vpop.permute.xlu0 %1053
  %1055 = vrot.lane.b32.xlu0 %v582, 123
  %v1056 = vpop.permute.xlu0 %1055
  %1057 = vrot.lane.b32.xlu0 %v583, 123
  %v1058 = vpop.permute.xlu0 %1057
  %1059 = vrot.lane.b32.xlu0 %v584, 123
  %v1060 = vpop.permute.xlu0 %1059
  %1061 = vrot.lane.b32.xlu0 %v585, 123
  %v1062 = vpop.permute.xlu0 %1061
  %1063 = vrot.lane.b32.xlu0 %v586, 123
  %v1064 = vpop.permute.xlu0 %1063
  %1065 = vrot.lane.b32.xlu0 %v587, 123
  %v1066 = vpop.permute.xlu0 %1065
  %1067 = vrot.lane.b32.xlu0 %v588, 123
  %v1068 = vpop.permute.xlu0 %1067
  %1069 = vrot.lane.b32.xlu0 %v563, 123
  %v1070 = vpop.permute.xlu0 %1069
  %1071 = vrot.lane.b32.xlu0 %v640, 123
  %v1072 = vpop.permute.xlu0 %1071
  %1073 = vrot.lane.b32.xlu0 %v641, 123
  %v1074 = vpop.permute.xlu0 %1073
  %1075 = vrot.lane.b32.xlu0 %v642, 123
  %v1076 = vpop.permute.xlu0 %1075
  %1077 = vrot.lane.b32.xlu0 %v643, 123
  %v1078 = vpop.permute.xlu0 %1077
  %1079 = vrot.lane.b32.xlu0 %v644, 123
  %v1080 = vpop.permute.xlu0 %1079
  %1081 = vrot.lane.b32.xlu0 %v645, 123
  %v1082 = vpop.permute.xlu0 %1081
  %1083 = vrot.lane.b32.xlu0 %v646, 123
  %v1084 = vpop.permute.xlu0 %1083
  %1085 = vrot.lane.b32.xlu0 %v647, 123
  %v1086 = vpop.permute.xlu0 %1085
  %1087 = vrot.lane.b32.xlu0 %v648, 123
  %v1088 = vpop.permute.xlu0 %1087
  %1089 = vrot.lane.b32.xlu0 %v649, 123
  %v1090 = vpop.permute.xlu0 %1089
  %1091 = vrot.lane.b32.xlu0 %v650, 123
  %v1092 = vpop.permute.xlu0 %1091
  %1093 = vrot.lane.b32.xlu0 %v651, 123
  %v1094 = vpop.permute.xlu0 %1093
  %1095 = vrot.lane.b32.xlu0 %v652, 123
  %v1096 = vpop.permute.xlu0 %1095
  %1097 = vrot.lane.b32.xlu0 %v653, 123
  %v1098 = vpop.permute.xlu0 %1097
  %1099 = vrot.lane.b32.xlu0 %v654, 123
  %v1100 = vpop.permute.xlu0 %1099
  %1101 = vrot.lane.b32.xlu0 %v655, 123
  %v1102 = vpop.permute.xlu0 %1101
  %1103 = vrot.lane.b32.xlu0 %v656, 123
  %v1104 = vpop.permute.xlu0 %1103
  %1105 = vrot.lane.b32.xlu0 %v657, 123
  %v1106 = vpop.permute.xlu0 %1105
  %1107 = vrot.lane.b32.xlu0 %v658, 123
  %v1108 = vpop.permute.xlu0 %1107
  %1109 = vrot.lane.b32.xlu0 %v659, 123
  %v1110 = vpop.permute.xlu0 %1109
  %1111 = vrot.lane.b32.xlu0 %v660, 123
  %v1112 = vpop.permute.xlu0 %1111
  %1113 = vrot.lane.b32.xlu0 %v661, 123
  %v1114 = vpop.permute.xlu0 %1113
  %1115 = vrot.lane.b32.xlu0 %v662, 123
  %v1116 = vpop.permute.xlu0 %1115
  %1117 = vrot.lane.b32.xlu0 %v663, 123
  %v1118 = vpop.permute.xlu0 %1117
  %1119 = vrot.lane.b32.xlu0 %v638, 123
  %v1120 = vpop.permute.xlu0 %1119
  %vm1121 = vcmask 1006592
  %v1122 = vsel %vm1121, %v672, %v674
  %v1123 = vsel %vm1121, %v674, %v676
  %v1124 = vsel %vm1121, %v676, %v678
  %v1125 = vsel %vm1121, %v678, %v680
  %v1126 = vsel %vm1121, %v680, %v682
  %v1127 = vsel %vm1121, %v682, %v684
  %v1128 = vsel %vm1121, %v684, %v686
  %v1129 = vsel %vm1121, %v686, %v688
  %v1130 = vsel %vm1121, %v688, %v690
  %v1131 = vsel %vm1121, %v690, %v692
  %v1132 = vsel %vm1121, %v692, %v694
  %v1133 = vsel %vm1121, %v694, %v696
  %v1134 = vsel %vm1121, %v696, %v698
  %v1135 = vsel %vm1121, %v698, %v700
  %v1136 = vsel %vm1121, %v700, %v702
  %v1137 = vsel %vm1121, %v702, %v704
  %v1138 = vsel %vm1121, %v704, %v706
  %v1139 = vsel %vm1121, %v706, %v708
  %v1140 = vsel %vm1121, %v708, %v710
  %v1141 = vsel %vm1121, %v710, %v712
  %v1142 = vsel %vm1121, %v712, %v714
  %v1143 = vsel %vm1121, %v714, %v716
  %v1144 = vsel %vm1121, %v716, %v718
  %v1145 = vsel %vm1121, %v718, %v720
  %v1146 = vsel %vm1121, %v722, %v724
  %v1147 = vsel %vm1121, %v724, %v726
  %v1148 = vsel %vm1121, %v726, %v728
  %v1149 = vsel %vm1121, %v728, %v730
  %v1150 = vsel %vm1121, %v730, %v732
  %v1151 = vsel %vm1121, %v732, %v734
  %v1152 = vsel %vm1121, %v734, %v736
  %v1153 = vsel %vm1121, %v736, %v738
  %v1154 = vsel %vm1121, %v738, %v740
  %v1155 = vsel %vm1121, %v740, %v742
  %v1156 = vsel %vm1121, %v742, %v744
  %v1157 = vsel %vm1121, %v744, %v746
  %v1158 = vsel %vm1121, %v746, %v748
  %v1159 = vsel %vm1121, %v748, %v750
  %v1160 = vsel %vm1121, %v750, %v752
  %v1161 = vsel %vm1121, %v752, %v754
  %v1162 = vsel %vm1121, %v754, %v756
  %v1163 = vsel %vm1121, %v756, %v758
  %v1164 = vsel %vm1121, %v758, %v760
  %v1165 = vsel %vm1121, %v760, %v762
  %v1166 = vsel %vm1121, %v762, %v764
  %v1167 = vsel %vm1121, %v764, %v766
  %v1168 = vsel %vm1121, %v766, %v768
  %v1169 = vsel %vm1121, %v768, %v770
  %v1170 = vsel %vm1121, %v772, %v774
  %v1171 = vsel %vm1121, %v774, %v776
  %v1172 = vsel %vm1121, %v776, %v778
  %v1173 = vsel %vm1121, %v778, %v780
  %v1174 = vsel %vm1121, %v780, %v782
  %v1175 = vsel %vm1121, %v782, %v784
  %v1176 = vsel %vm1121, %v784, %v786
  %v1177 = vsel %vm1121, %v786, %v788
  %v1178 = vsel %vm1121, %v788, %v790
  %v1179 = vsel %vm1121, %v790, %v792
  %v1180 = vsel %vm1121, %v792, %v794
  %v1181 = vsel %vm1121, %v794, %v796
  %v1182 = vsel %vm1121, %v796, %v798
  %v1183 = vsel %vm1121, %v798, %v800
  %v1184 = vsel %vm1121, %v800, %v802
  %v1185 = vsel %vm1121, %v802, %v804
  %v1186 = vsel %vm1121, %v804, %v806
  %v1187 = vsel %vm1121, %v806, %v808
  %v1188 = vsel %vm1121, %v808, %v810
  %v1189 = vsel %vm1121, %v810, %v812
  %v1190 = vsel %vm1121, %v812, %v814
  %v1191 = vsel %vm1121, %v814, %v816
  %v1192 = vsel %vm1121, %v816, %v818
  %v1193 = vsel %vm1121, %v818, %v820
  %v1194 = vsel %vm1121, %v822, %v824
  %v1195 = vsel %vm1121, %v824, %v826
  %v1196 = vsel %vm1121, %v826, %v828
  %v1197 = vsel %vm1121, %v828, %v830
  %v1198 = vsel %vm1121, %v830, %v832
  %v1199 = vsel %vm1121, %v832, %v834
  %v1200 = vsel %vm1121, %v834, %v836
  %v1201 = vsel %vm1121, %v836, %v838
  %v1202 = vsel %vm1121, %v838, %v840
  %v1203 = vsel %vm1121, %v840, %v842
  %v1204 = vsel %vm1121, %v842, %v844
  %v1205 = vsel %vm1121, %v844, %v846
  %v1206 = vsel %vm1121, %v846, %v848
  %v1207 = vsel %vm1121, %v848, %v850
  %v1208 = vsel %vm1121, %v850, %v852
  %v1209 = vsel %vm1121, %v852, %v854
  %v1210 = vsel %vm1121, %v854, %v856
  %v1211 = vsel %vm1121, %v856, %v858
  %v1212 = vsel %vm1121, %v858, %v860
  %v1213 = vsel %vm1121, %v860, %v862
  %v1214 = vsel %vm1121, %v862, %v864
  %v1215 = vsel %vm1121, %v864, %v866
  %v1216 = vsel %vm1121, %v866, %v868
  %v1217 = vsel %vm1121, %v868, %v870
  %v1218 = vsel %vm1121, %v872, %v874
  %v1219 = vsel %vm1121, %v874, %v876
  %v1220 = vsel %vm1121, %v876, %v878
  %v1221 = vsel %vm1121, %v878, %v880
  %v1222 = vsel %vm1121, %v880, %v882
  %v1223 = vsel %vm1121, %v882, %v884
  %v1224 = vsel %vm1121, %v884, %v886
  %v1225 = vsel %vm1121, %v886, %v888
  %v1226 = vsel %vm1121, %v888, %v890
  %v1227 = vsel %vm1121, %v890, %v892
  %v1228 = vsel %vm1121, %v892, %v894
  %v1229 = vsel %vm1121, %v894, %v896
  %v1230 = vsel %vm1121, %v896, %v898
  %v1231 = vsel %vm1121, %v898, %v900
  %v1232 = vsel %vm1121, %v900, %v902
  %v1233 = vsel %vm1121, %v902, %v904
  %v1234 = vsel %vm1121, %v904, %v906
  %v1235 = vsel %vm1121, %v906, %v908
  %v1236 = vsel %vm1121, %v908, %v910
  %v1237 = vsel %vm1121, %v910, %v912
  %v1238 = vsel %vm1121, %v912, %v914
  %v1239 = vsel %vm1121, %v914, %v916
  %v1240 = vsel %vm1121, %v916, %v918
  %v1241 = vsel %vm1121, %v918, %v920
  %v1242 = vsel %vm1121, %v922, %v924
  %v1243 = vsel %vm1121, %v924, %v926
  %v1244 = vsel %vm1121, %v926, %v928
  %v1245 = vsel %vm1121, %v928, %v930
  %v1246 = vsel %vm1121, %v930, %v932
  %v1247 = vsel %vm1121, %v932, %v934
  %v1248 = vsel %vm1121, %v934, %v936
  %v1249 = vsel %vm1121, %v936, %v938
  %v1250 = vsel %vm1121, %v938, %v940
  %v1251 = vsel %vm1121, %v940, %v942
  %v1252 = vsel %vm1121, %v942, %v944
  %v1253 = vsel %vm1121, %v944, %v946
  %v1254 = vsel %vm1121, %v946, %v948
  %v1255 = vsel %vm1121, %v948, %v950
  %v1256 = vsel %vm1121, %v950, %v952
  %v1257 = vsel %vm1121, %v952, %v954
  %v1258 = vsel %vm1121, %v954, %v956
  %v1259 = vsel %vm1121, %v956, %v958
  %v1260 = vsel %vm1121, %v958, %v960
  %v1261 = vsel %vm1121, %v960, %v962
  %v1262 = vsel %vm1121, %v962, %v964
  %v1263 = vsel %vm1121, %v964, %v966
  %v1264 = vsel %vm1121, %v966, %v968
  %v1265 = vsel %vm1121, %v968, %v970
  %v1266 = vsel %vm1121, %v972, %v974
  %v1267 = vsel %vm1121, %v974, %v976
  %v1268 = vsel %vm1121, %v976, %v978
  %v1269 = vsel %vm1121, %v978, %v980
  %v1270 = vsel %vm1121, %v980, %v982
  %v1271 = vsel %vm1121, %v982, %v984
  %v1272 = vsel %vm1121, %v984, %v986
  %v1273 = vsel %vm1121, %v986, %v988
  %v1274 = vsel %vm1121, %v988, %v990
  %v1275 = vsel %vm1121, %v990, %v992
  %v1276 = vsel %vm1121, %v992, %v994
  %v1277 = vsel %vm1121, %v994, %v996
  %v1278 = vsel %vm1121, %v996, %v998
  %v1279 = vsel %vm1121, %v998, %v1000
  %v1280 = vsel %vm1121, %v1000, %v1002
  %v1281 = vsel %vm1121, %v1002, %v1004
  %v1282 = vsel %vm1121, %v1004, %v1006
  %v1283 = vsel %vm1121, %v1006, %v1008
  %v1284 = vsel %vm1121, %v1008, %v1010
  %v1285 = vsel %vm1121, %v1010, %v1012
  %v1286 = vsel %vm1121, %v1012, %v1014
  %v1287 = vsel %vm1121, %v1014, %v1016
  %v1288 = vsel %vm1121, %v1016, %v1018
  %v1289 = vsel %vm1121, %v1018, %v1020
  %v1290 = vsel %vm1121, %v1022, %v1024
  %v1291 = vsel %vm1121, %v1024, %v1026
  %v1292 = vsel %vm1121, %v1026, %v1028
  %v1293 = vsel %vm1121, %v1028, %v1030
  %v1294 = vsel %vm1121, %v1030, %v1032
  %v1295 = vsel %vm1121, %v1032, %v1034
  %v1296 = vsel %vm1121, %v1034, %v1036
  %v1297 = vsel %vm1121, %v1036, %v1038
  %v1298 = vsel %vm1121, %v1038, %v1040
  %v1299 = vsel %vm1121, %v1040, %v1042
  %v1300 = vsel %vm1121, %v1042, %v1044
  %v1301 = vsel %vm1121, %v1044, %v1046
  %v1302 = vsel %vm1121, %v1046, %v1048
  %v1303 = vsel %vm1121, %v1048, %v1050
  %v1304 = vsel %vm1121, %v1050, %v1052
  %v1305 = vsel %vm1121, %v1052, %v1054
  %v1306 = vsel %vm1121, %v1054, %v1056
  %v1307 = vsel %vm1121, %v1056, %v1058
  %v1308 = vsel %vm1121, %v1058, %v1060
  %v1309 = vsel %vm1121, %v1060, %v1062
  %v1310 = vsel %vm1121, %v1062, %v1064
  %v1311 = vsel %vm1121, %v1064, %v1066
  %v1312 = vsel %vm1121, %v1066, %v1068
  %v1313 = vsel %vm1121, %v1068, %v1070
  %v1314 = vsel %vm1121, %v1072, %v1074
  %v1315 = vsel %vm1121, %v1074, %v1076
  %v1316 = vsel %vm1121, %v1076, %v1078
  %v1317 = vsel %vm1121, %v1078, %v1080
  %v1318 = vsel %vm1121, %v1080, %v1082
  %v1319 = vsel %vm1121, %v1082, %v1084
  %v1320 = vsel %vm1121, %v1084, %v1086
  %v1321 = vsel %vm1121, %v1086, %v1088
  %v1322 = vsel %vm1121, %v1088, %v1090
  %v1323 = vsel %vm1121, %v1090, %v1092
  %v1324 = vsel %vm1121, %v1092, %v1094
  %v1325 = vsel %vm1121, %v1094, %v1096
  %v1326 = vsel %vm1121, %v1096, %v1098
  %v1327 = vsel %vm1121, %v1098, %v1100
  %v1328 = vsel %vm1121, %v1100, %v1102
  %v1329 = vsel %vm1121, %v1102, %v1104
  %v1330 = vsel %vm1121, %v1104, %v1106
  %v1331 = vsel %vm1121, %v1106, %v1108
  %v1332 = vsel %vm1121, %v1108, %v1110
  %v1333 = vsel %vm1121, %v1110, %v1112
  %v1334 = vsel %vm1121, %v1112, %v1114
  %v1335 = vsel %vm1121, %v1114, %v1116
  %v1336 = vsel %vm1121, %v1116, %v1118
  %v1337 = vsel %vm1121, %v1118, %v1120
  %vm1554 = vcmask 588800
  %v1556 = vsel %vm1554, %v664, 0
  %1558 = vmatprep.subr.mxu0 0.0
  %1559 = vmatpush1.msra.mxu0 0.0
  %1560 = vmatprep.subr.mxu0 0.0
  %1561 = vmatpush1.msra.mxu0 0.0
  %1562 = vmatprep.subr.mxu0 0.0
  %1563 = vmatpush1.msra.mxu0 0.0
  %1564 = vmatprep.subr.mxu0 0.0
  %1565 = vmatpush1.msra.mxu0 0.0
  %1566 = vmatprep.subr.mxu0 0.0
  %1567 = vmatpush1.msra.mxu0 0.0
  %1568 = vmatprep.subr.mxu0 0.0
  %1569 = vmatpush1.msra.mxu0 0.0
  %1570 = vmatprep.subr.mxu0 0.0
  %1571 = vmatpush1.msra.mxu0 0.0
  %1572 = vmatprep.subr.mxu0 %v1315
  %1573 = vmatpush1.msra.mxu0 %v1314
  %1574 = vmatprep.subr.mxu0 %v1291
  %1575 = vmatpush1.msra.mxu0 %v1290
  %1576 = vmatprep.subr.mxu0 %v1267
  %1577 = vmatpush1.msra.mxu0 %v1266
  %1578 = vmatprep.subr.mxu0 %v1243
  %1579 = vmatpush1.msra.mxu0 %v1242
  %1580 = vmatprep.subr.mxu0 %v1219
  %1581 = vmatpush1.msra.mxu0 %v1218
  %1582 = vmatprep.subr.mxu0 %v1195
  %1583 = vmatpush1.msra.mxu0 %v1194
  %1584 = vmatprep.subr.mxu0 %v1171
  %1585 = vmatpush1.msra.mxu0 %v1170
  %1586 = vmatprep.subr.mxu0 %v1147
  %1587 = vmatpush1.msra.mxu0 %v1146
  %1588 = vmatprep.subr.mxu0 %v1123
  %1589 = vmatpush1.msra.mxu0 %v1122
  %1590 = vmatprep.subr.mxu0 0.0
  %1591 = vmatpush2.msra.mxu0 0.0
  %1592 = vmatprep.subr.mxu0 0.0
  %1593 = vmatpush2.msra.mxu0 0.0
  %1594 = vmatprep.subr.mxu0 0.0
  %1595 = vmatpush2.msra.mxu0 0.0
  %1596 = vmatprep.subr.mxu0 0.0
  %1597 = vmatpush2.msra.mxu0 0.0
  %1598 = vmatprep.subr.mxu0 0.0
  %1599 = vmatpush2.msra.mxu0 0.0
  %1600 = vmatprep.subr.mxu0 0.0
  %1601 = vmatpush2.msra.mxu0 0.0
  %1602 = vmatprep.subr.mxu0 0.0
  %1603 = vmatpush2.msra.mxu0 0.0
  %1604 = vmatprep.subr.mxu0 0.0
  %1605 = vmatpush2.msra.mxu0 0.0
  %1606 = vmatprep.subr.mxu0 0.0
  %1607 = vmatpush2.msra.mxu0 0.0
  %1608 = vmatprep.subr.mxu0 0.0
  %1609 = vmatpush2.msra.mxu0 0.0
  %1610 = vmatprep.subr.mxu0 0.0
  %1611 = vmatpush2.msra.mxu0 0.0
  %1612 = vmatprep.subr.mxu0 0.0
  %1613 = vmatpush2.msra.mxu0 0.0
  %1614 = vmatprep.subr.mxu0 0.0
  %1615 = vmatpush2.msra.mxu0 0.0
  %1616 = vmatprep.subr.mxu0 0.0
  %1617 = vmatpush2.msra.mxu0 0.0
  %1618 = vmatprep.subr.mxu0 0.0
  %1619 = vmatpush2.msra.mxu0 0.0
  %1620 = vmatprep.subr.mxu0 0.0
  %1621 = vmatpush2.msra.mxu0 0.0
  %1622 = vmatprep.mubr.f32.mxu0 0.0
  %1623 = vmatmul.mubr.f32.gmra.mxu0 %v1556
  %v1624 = vpop.f32.mrf.mxu0
  %v1625 = vadd.f32 %v669, %v1624
  %v1626 = vpop.f32.mrf.mxu0
  %v1627 = vadd.f32 %v669, %v1626
  %1628 = vdwg.mxu0
  %1629 = vmatprep.subr.mxu0 0.0
  %1630 = vmatpush1.msra.mxu0 0.0
  %1631 = vmatprep.subr.mxu0 0.0
  %1632 = vmatpush1.msra.mxu0 0.0
  %1633 = vmatprep.subr.mxu0 0.0
  %1634 = vmatpush1.msra.mxu0 0.0
  %1635 = vmatprep.subr.mxu0 0.0
  %1636 = vmatpush1.msra.mxu0 0.0
  %1637 = vmatprep.subr.mxu0 0.0
  %1638 = vmatpush1.msra.mxu0 0.0
  %1639 = vmatprep.subr.mxu0 0.0
  %1640 = vmatpush1.msra.mxu0 0.0
  %1641 = vmatprep.subr.mxu0 0.0
  %1642 = vmatpush1.msra.mxu0 0.0
  %1643 = vmatprep.subr.mxu0 %v1317
  %1644 = vmatpush1.msra.mxu0 %v1316
  %1645 = vmatprep.subr.mxu0 %v1293
  %1646 = vmatpush1.msra.mxu0 %v1292
  %1647 = vmatprep.subr.mxu0 %v1269
  %1648 = vmatpush1.msra.mxu0 %v1268
  %1649 = vmatprep.subr.mxu0 %v1245
  %1650 = vmatpush1.msra.mxu0 %v1244
  %1651 = vmatprep.subr.mxu0 %v1221
  %1652 = vmatpush1.msra.mxu0 %v1220
  %1653 = vmatprep.subr.mxu0 %v1197
  %1654 = vmatpush1.msra.mxu0 %v1196
  %1655 = vmatprep.subr.mxu0 %v1173
  %1656 = vmatpush1.msra.mxu0 %v1172
  %1657 = vmatprep.subr.mxu0 %v1149
  %1658 = vmatpush1.msra.mxu0 %v1148
  %1659 = vmatprep.subr.mxu0 %v1125
  %1660 = vmatpush1.msra.mxu0 %v1124
  %1661 = vmatprep.subr.mxu0 0.0
  %1662 = vmatpush2.msra.mxu0 0.0
  %1663 = vmatprep.subr.mxu0 0.0
  %1664 = vmatpush2.msra.mxu0 0.0
  %1665 = vmatprep.subr.mxu0 0.0
  %1666 = vmatpush2.msra.mxu0 0.0
  %1667 = vmatprep.subr.mxu0 0.0
  %1668 = vmatpush2.msra.mxu0 0.0
  %1669 = vmatprep.subr.mxu0 0.0
  %1670 = vmatpush2.msra.mxu0 0.0
  %1671 = vmatprep.subr.mxu0 0.0
  %1672 = vmatpush2.msra.mxu0 0.0
  %1673 = vmatprep.subr.mxu0 0.0
  %1674 = vmatpush2.msra.mxu0 0.0
  %1675 = vmatprep.subr.mxu0 0.0
  %1676 = vmatpush2.msra.mxu0 0.0
  %1677 = vmatprep.subr.mxu0 0.0
  %1678 = vmatpush2.msra.mxu0 0.0
  %1679 = vmatprep.subr.mxu0 0.0
  %1680 = vmatpush2.msra.mxu0 0.0
  %1681 = vmatprep.subr.mxu0 0.0
  %1682 = vmatpush2.msra.mxu0 0.0
  %1683 = vmatprep.subr.mxu0 0.0
  %1684 = vmatpush2.msra.mxu0 0.0
  %1685 = vmatprep.subr.mxu0 0.0
  %1686 = vmatpush2.msra.mxu0 0.0
  %1687 = vmatprep.subr.mxu0 0.0
  %1688 = vmatpush2.msra.mxu0 0.0
  %1689 = vmatprep.subr.mxu0 0.0
  %1690 = vmatpush2.msra.mxu0 0.0
  %1691 = vmatprep.subr.mxu0 0.0
  %1692 = vmatpush2.msra.mxu0 0.0
  %1693 = vmatprep.mubr.f32.mxu0 0.0
  %1694 = vmatmul.mubr.f32.gmra.mxu0 %v1556
  %v1695 = vpop.f32.mrf.mxu0
  %v1696 = vadd.f32 %v669, %v1695
  %v1697 = vpop.f32.mrf.mxu0
  %v1698 = vadd.f32 %v669, %v1697
  %1699 = vdwg.mxu0
  %1700 = vmatprep.subr.mxu0 0.0
  %1701 = vmatpush1.msra.mxu0 0.0
  %1702 = vmatprep.subr.mxu0 0.0
  %1703 = vmatpush1.msra.mxu0 0.0
  %1704 = vmatprep.subr.mxu0 0.0
  %1705 = vmatpush1.msra.mxu0 0.0
  %1706 = vmatprep.subr.mxu0 0.0
  %1707 = vmatpush1.msra.mxu0 0.0
  %1708 = vmatprep.subr.mxu0 0.0
  %1709 = vmatpush1.msra.mxu0 0.0
  %1710 = vmatprep.subr.mxu0 0.0
  %1711 = vmatpush1.msra.mxu0 0.0
  %1712 = vmatprep.subr.mxu0 0.0
  %1713 = vmatpush1.msra.mxu0 0.0
  %1714 = vmatprep.subr.mxu0 %v1319
  %1715 = vmatpush1.msra.mxu0 %v1318
  %1716 = vmatprep.subr.mxu0 %v1295
  %1717 = vmatpush1.msra.mxu0 %v1294
  %1718 = vmatprep.subr.mxu0 %v1271
  %1719 = vmatpush1.msra.mxu0 %v1270
  %1720 = vmatprep.subr.mxu0 %v1247
  %1721 = vmatpush1.msra.mxu0 %v1246
  %1722 = vmatprep.subr.mxu0 %v1223
  %1723 = vmatpush1.msra.mxu0 %v1222
  %1724 = vmatprep.subr.mxu0 %v1199
  %1725 = vmatpush1.msra.mxu0 %v1198
  %1726 = vmatprep.subr.mxu0 %v1175
  %1727 = vmatpush1.msra.mxu0 %v1174
  %1728 = vmatprep.subr.mxu0 %v1151
  %1729 = vmatpush1.msra.mxu0 %v1150
  %1730 = vmatprep.subr.mxu0 %v1127
  %1731 = vmatpush1.msra.mxu0 %v1126
  %1732 = vmatprep.subr.mxu0 0.0
  %1733 = vmatpush2.msra.mxu0 0.0
  %1734 = vmatprep.subr.mxu0 0.0
  %1735 = vmatpush2.msra.mxu0 0.0
  %1736 = vmatprep.subr.mxu0 0.0
  %1737 = vmatpush2.msra.mxu0 0.0
  %1738 = vmatprep.subr.mxu0 0.0
  %1739 = vmatpush2.msra.mxu0 0.0
  %1740 = vmatprep.subr.mxu0 0.0
  %1741 = vmatpush2.msra.mxu0 0.0
  %1742 = vmatprep.subr.mxu0 0.0
  %1743 = vmatpush2.msra.mxu0 0.0
  %1744 = vmatprep.subr.mxu0 0.0
  %1745 = vmatpush2.msra.mxu0 0.0
  %1746 = vmatprep.subr.mxu0 0.0
  %1747 = vmatpush2.msra.mxu0 0.0
  %1748 = vmatprep.subr.mxu0 0.0
  %1749 = vmatpush2.msra.mxu0 0.0
  %1750 = vmatprep.subr.mxu0 0.0
  %1751 = vmatpush2.msra.mxu0 0.0
  %1752 = vmatprep.subr.mxu0 0.0
  %1753 = vmatpush2.msra.mxu0 0.0
  %1754 = vmatprep.subr.mxu0 0.0
  %1755 = vmatpush2.msra.mxu0 0.0
  %1756 = vmatprep.subr.mxu0 0.0
  %1757 = vmatpush2.msra.mxu0 0.0
  %1758 = vmatprep.subr.mxu0 0.0
  %1759 = vmatpush2.msra.mxu0 0.0
  %1760 = vmatprep.subr.mxu0 0.0
  %1761 = vmatpush2.msra.mxu0 0.0
  %1762 = vmatprep.subr.mxu0 0.0
  %1763 = vmatpush2.msra.mxu0 0.0
  %1764 = vmatprep.mubr.f32.mxu0 0.0
  %1765 = vmatmul.mubr.f32.gmra.mxu0 %v1556
  %v1766 = vpop.f32.mrf.mxu0
  %v1767 = vadd.f32 %v669, %v1766
  %v1768 = vpop.f32.mrf.mxu0
  %v1769 = vadd.f32 %v669, %v1768
  %1770 = vdwg.mxu0
  %1771 = vmatprep.subr.mxu0 0.0
  %1772 = vmatpush1.msra.mxu0 0.0
  %1773 = vmatprep.subr.mxu0 0.0
  %1774 = vmatpush1.msra.mxu0 0.0
  %1775 = vmatprep.subr.mxu0 0.0
  %1776 = vmatpush1.msra.mxu0 0.0
  %1777 = vmatprep.subr.mxu0 0.0
  %1778 = vmatpush1.msra.mxu0 0.0
  %1779 = vmatprep.subr.mxu0 0.0
  %1780 = vmatpush1.msra.mxu0 0.0
  %1781 = vmatprep.subr.mxu0 0.0
  %1782 = vmatpush1.msra.mxu0 0.0
  %1783 = vmatprep.subr.mxu0 0.0
  %1784 = vmatpush1.msra.mxu0 0.0
  %1785 = vmatprep.subr.mxu0 %v1321
  %1786 = vmatpush1.msra.mxu0 %v1320
  %1787 = vmatprep.subr.mxu0 %v1297
  %1788 = vmatpush1.msra.mxu0 %v1296
  %1789 = vmatprep.subr.mxu0 %v1273
  %1790 = vmatpush1.msra.mxu0 %v1272
  %1791 = vmatprep.subr.mxu0 %v1249
  %1792 = vmatpush1.msra.mxu0 %v1248
  %1793 = vmatprep.subr.mxu0 %v1225
  %1794 = vmatpush1.msra.mxu0 %v1224
  %1795 = vmatprep.subr.mxu0 %v1201
  %1796 = vmatpush1.msra.mxu0 %v1200
  %1797 = vmatprep.subr.mxu0 %v1177
  %1798 = vmatpush1.msra.mxu0 %v1176
  %1799 = vmatprep.subr.mxu0 %v1153
  %1800 = vmatpush1.msra.mxu0 %v1152
  %1801 = vmatprep.subr.mxu0 %v1129
  %1802 = vmatpush1.msra.mxu0 %v1128
  %1803 = vmatprep.subr.mxu0 0.0
  %1804 = vmatpush2.msra.mxu0 0.0
  %1805 = vmatprep.subr.mxu0 0.0
  %1806 = vmatpush2.msra.mxu0 0.0
  %1807 = vmatprep.subr.mxu0 0.0
  %1808 = vmatpush2.msra.mxu0 0.0
  %1809 = vmatprep.subr.mxu0 0.0
  %1810 = vmatpush2.msra.mxu0 0.0
  %1811 = vmatprep.subr.mxu0 0.0
  %1812 = vmatpush2.msra.mxu0 0.0
  %1813 = vmatprep.subr.mxu0 0.0
  %1814 = vmatpush2.msra.mxu0 0.0
  %1815 = vmatprep.subr.mxu0 0.0
  %1816 = vmatpush2.msra.mxu0 0.0
  %1817 = vmatprep.subr.mxu0 0.0
  %1818 = vmatpush2.msra.mxu0 0.0
  %1819 = vmatprep.subr.mxu0 0.0
  %1820 = vmatpush2.msra.mxu0 0.0
  %1821 = vmatprep.subr.mxu0 0.0
  %1822 = vmatpush2.msra.mxu0 0.0
  %1823 = vmatprep.subr.mxu0 0.0
  %1824 = vmatpush2.msra.mxu0 0.0
  %1825 = vmatprep.subr.mxu0 0.0
  %1826 = vmatpush2.msra.mxu0 0.0
  %1827 = vmatprep.subr.mxu0 0.0
  %1828 = vmatpush2.msra.mxu0 0.0
  %1829 = vmatprep.subr.mxu0 0.0
  %1830 = vmatpush2.msra.mxu0 0.0
  %1831 = vmatprep.subr.mxu0 0.0
  %1832 = vmatpush2.msra.mxu0 0.0
  %1833 = vmatprep.subr.mxu0 0.0
  %1834 = vmatpush2.msra.mxu0 0.0
  %1835 = vmatprep.mubr.f32.mxu0 0.0
  %1836 = vmatmul.mubr.f32.gmra.mxu0 %v1556
  %v1837 = vpop.f32.mrf.mxu0
  %v1838 = vadd.f32 %v669, %v1837
  %v1839 = vpop.f32.mrf.mxu0
  %v1840 = vadd.f32 %v669, %v1839
  %1841 = vdwg.mxu0
  %1842 = vmatprep.subr.mxu0 0.0
  %1843 = vmatpush1.msra.mxu0 0.0
  %1844 = vmatprep.subr.mxu0 0.0
  %1845 = vmatpush1.msra.mxu0 0.0
  %1846 = vmatprep.subr.mxu0 0.0
  %1847 = vmatpush1.msra.mxu0 0.0
  %1848 = vmatprep.subr.mxu0 0.0
  %1849 = vmatpush1.msra.mxu0 0.0
  %1850 = vmatprep.subr.mxu0 0.0
  %1851 = vmatpush1.msra.mxu0 0.0
  %1852 = vmatprep.subr.mxu0 0.0
  %1853 = vmatpush1.msra.mxu0 0.0
  %1854 = vmatprep.subr.mxu0 0.0
  %1855 = vmatpush1.msra.mxu0 0.0
  %1856 = vmatprep.subr.mxu0 %v1323
  %1857 = vmatpush1.msra.mxu0 %v1322
  %1858 = vmatprep.subr.mxu0 %v1299
  %1859 = vmatpush1.msra.mxu0 %v1298
  %1860 = vmatprep.subr.mxu0 %v1275
  %1861 = vmatpush1.msra.mxu0 %v1274
  %1862 = vmatprep.subr.mxu0 %v1251
  %1863 = vmatpush1.msra.mxu0 %v1250
  %1864 = vmatprep.subr.mxu0 %v1227
  %1865 = vmatpush1.msra.mxu0 %v1226
  %1866 = vmatprep.subr.mxu0 %v1203
  %1867 = vmatpush1.msra.mxu0 %v1202
  %1868 = vmatprep.subr.mxu0 %v1179
  %1869 = vmatpush1.msra.mxu0 %v1178
  %1870 = vmatprep.subr.mxu0 %v1155
  %1871 = vmatpush1.msra.mxu0 %v1154
  %1872 = vmatprep.subr.mxu0 %v1131
  %1873 = vmatpush1.msra.mxu0 %v1130
  %1874 = vmatprep.subr.mxu0 0.0
  %1875 = vmatpush2.msra.mxu0 0.0
  %1876 = vmatprep.subr.mxu0 0.0
  %1877 = vmatpush2.msra.mxu0 0.0
  %1878 = vmatprep.subr.mxu0 0.0
  %1879 = vmatpush2.msra.mxu0 0.0
  %1880 = vmatprep.subr.mxu0 0.0
  %1881 = vmatpush2.msra.mxu0 0.0
  %1882 = vmatprep.subr.mxu0 0.0
  %1883 = vmatpush2.msra.mxu0 0.0
  %1884 = vmatprep.subr.mxu0 0.0
  %1885 = vmatpush2.msra.mxu0 0.0
  %1886 = vmatprep.subr.mxu0 0.0
  %1887 = vmatpush2.msra.mxu0 0.0
  %1888 = vmatprep.subr.mxu0 0.0
  %1889 = vmatpush2.msra.mxu0 0.0
  %1890 = vmatprep.subr.mxu0 0.0
  %1891 = vmatpush2.msra.mxu0 0.0
  %1892 = vmatprep.subr.mxu0 0.0
  %1893 = vmatpush2.msra.mxu0 0.0
  %1894 = vmatprep.subr.mxu0 0.0
  %1895 = vmatpush2.msra.mxu0 0.0
  %1896 = vmatprep.subr.mxu0 0.0
  %1897 = vmatpush2.msra.mxu0 0.0
  %1898 = vmatprep.subr.mxu0 0.0
  %1899 = vmatpush2.msra.mxu0 0.0
  %1900 = vmatprep.subr.mxu0 0.0
  %1901 = vmatpush2.msra.mxu0 0.0
  %1902 = vmatprep.subr.mxu0 0.0
  %1903 = vmatpush2.msra.mxu0 0.0
  %1904 = vmatprep.subr.mxu0 0.0
  %1905 = vmatpush2.msra.mxu0 0.0
  %1906 = vmatprep.mubr.f32.mxu0 0.0
  %1907 = vmatmul.mubr.f32.gmra.mxu0 %v1556
  %v1908 = vpop.f32.mrf.mxu0
  %v1909 = vadd.f32 %v669, %v1908
  %v1910 = vpop.f32.mrf.mxu0
  %v1911 = vadd.f32 %v669, %v1910
  %1912 = vdwg.mxu0
  %1913 = vmatprep.subr.mxu0 0.0
  %1914 = vmatpush1.msra.mxu0 0.0
  %1915 = vmatprep.subr.mxu0 0.0
  %1916 = vmatpush1.msra.mxu0 0.0
  %1917 = vmatprep.subr.mxu0 0.0
  %1918 = vmatpush1.msra.mxu0 0.0
  %1919 = vmatprep.subr.mxu0 0.0
  %1920 = vmatpush1.msra.mxu0 0.0
  %1921 = vmatprep.subr.mxu0 0.0
  %1922 = vmatpush1.msra.mxu0 0.0
  %1923 = vmatprep.subr.mxu0 0.0
  %1924 = vmatpush1.msra.mxu0 0.0
  %1925 = vmatprep.subr.mxu0 0.0
  %1926 = vmatpush1.msra.mxu0 0.0
  %1927 = vmatprep.subr.mxu0 %v1325
  %1928 = vmatpush1.msra.mxu0 %v1324
  %1929 = vmatprep.subr.mxu0 %v1301
  %1930 = vmatpush1.msra.mxu0 %v1300
  %1931 = vmatprep.subr.mxu0 %v1277
  %1932 = vmatpush1.msra.mxu0 %v1276
  %1933 = vmatprep.subr.mxu0 %v1253
  %1934 = vmatpush1.msra.mxu0 %v1252
  %1935 = vmatprep.subr.mxu0 %v1229
  %1936 = vmatpush1.msra.mxu0 %v1228
  %1937 = vmatprep.subr.mxu0 %v1205
  %1938 = vmatpush1.msra.mxu0 %v1204
  %1939 = vmatprep.subr.mxu0 %v1181
  %1940 = vmatpush1.msra.mxu0 %v1180
  %1941 = vmatprep.subr.mxu0 %v1157
  %1942 = vmatpush1.msra.mxu0 %v1156
  %1943 = vmatprep.subr.mxu0 %v1133
  %1944 = vmatpush1.msra.mxu0 %v1132
  %1945 = vmatprep.subr.mxu0 0.0
  %1946 = vmatpush2.msra.mxu0 0.0
  %1947 = vmatprep.subr.mxu0 0.0
  %1948 = vmatpush2.msra.mxu0 0.0
  %1949 = vmatprep.subr.mxu0 0.0
  %1950 = vmatpush2.msra.mxu0 0.0
  %1951 = vmatprep.subr.mxu0 0.0
  %1952 = vmatpush2.msra.mxu0 0.0
  %1953 = vmatprep.subr.mxu0 0.0
  %1954 = vmatpush2.msra.mxu0 0.0
  %1955 = vmatprep.subr.mxu0 0.0
  %1956 = vmatpush2.msra.mxu0 0.0
  %1957 = vmatprep.subr.mxu0 0.0
  %1958 = vmatpush2.msra.mxu0 0.0
  %1959 = vmatprep.subr.mxu0 0.0
  %1960 = vmatpush2.msra.mxu0 0.0
  %1961 = vmatprep.subr.mxu0 0.0
  %1962 = vmatpush2.msra.mxu0 0.0
  %1963 = vmatprep.subr.mxu0 0.0
  %1964 = vmatpush2.msra.mxu0 0.0
  %1965 = vmatprep.subr.mxu0 0.0
  %1966 = vmatpush2.msra.mxu0 0.0
  %1967 = vmatprep.subr.mxu0 0.0
  %1968 = vmatpush2.msra.mxu0 0.0
  %1969 = vmatprep.subr.mxu0 0.0
  %1970 = vmatpush2.msra.mxu0 0.0
  %1971 = vmatprep.subr.mxu0 0.0
  %1972 = vmatpush2.msra.mxu0 0.0
  %1973 = vmatprep.subr.mxu0 0.0
  %1974 = vmatpush2.msra.mxu0 0.0
  %1975 = vmatprep.subr.mxu0 0.0
  %1976 = vmatpush2.msra.mxu0 0.0
  %1977 = vmatprep.mubr.f32.mxu0 0.0
  %1978 = vmatmul.mubr.f32.gmra.mxu0 %v1556
  %v1979 = vpop.f32.mrf.mxu0
  %v1980 = vadd.f32 %v669, %v1979
  %v1981 = vpop.f32.mrf.mxu0
  %v1982 = vadd.f32 %v669, %v1981
  %1983 = vdwg.mxu0
  %1984 = vmatprep.subr.mxu0 0.0
  %1985 = vmatpush1.msra.mxu0 0.0
  %1986 = vmatprep.subr.mxu0 0.0
  %1987 = vmatpush1.msra.mxu0 0.0
  %1988 = vmatprep.subr.mxu0 0.0
  %1989 = vmatpush1.msra.mxu0 0.0
  %1990 = vmatprep.subr.mxu0 0.0
  %1991 = vmatpush1.msra.mxu0 0.0
  %1992 = vmatprep.subr.mxu0 0.0
  %1993 = vmatpush1.msra.mxu0 0.0
  %1994 = vmatprep.subr.mxu0 0.0
  %1995 = vmatpush1.msra.mxu0 0.0
  %1996 = vmatprep.subr.mxu0 0.0
  %1997 = vmatpush1.msra.mxu0 0.0
  %1998 = vmatprep.subr.mxu0 %v1327
  %1999 = vmatpush1.msra.mxu0 %v1326
  %2000 = vmatprep.subr.mxu0 %v1303
  %2001 = vmatpush1.msra.mxu0 %v1302
  %2002 = vmatprep.subr.mxu0 %v1279
  %2003 = vmatpush1.msra.mxu0 %v1278
  %2004 = vmatprep.subr.mxu0 %v1255
  %2005 = vmatpush1.msra.mxu0 %v1254
  %2006 = vmatprep.subr.mxu0 %v1231
  %2007 = vmatpush1.msra.mxu0 %v1230
  %2008 = vmatprep.subr.mxu0 %v1207
  %2009 = vmatpush1.msra.mxu0 %v1206
  %2010 = vmatprep.subr.mxu0 %v1183
  %2011 = vmatpush1.msra.mxu0 %v1182
  %2012 = vmatprep.subr.mxu0 %v1159
  %2013 = vmatpush1.msra.mxu0 %v1158
  %2014 = vmatprep.subr.mxu0 %v1135
  %2015 = vmatpush1.msra.mxu0 %v1134
  %2016 = vmatprep.subr.mxu0 0.0
  %2017 = vmatpush2.msra.mxu0 0.0
  %2018 = vmatprep.subr.mxu0 0.0
  %2019 = vmatpush2.msra.mxu0 0.0
  %2020 = vmatprep.subr.mxu0 0.0
  %2021 = vmatpush2.msra.mxu0 0.0
  %2022 = vmatprep.subr.mxu0 0.0
  %2023 = vmatpush2.msra.mxu0 0.0
  %2024 = vmatprep.subr.mxu0 0.0
  %2025 = vmatpush2.msra.mxu0 0.0
  %2026 = vmatprep.subr.mxu0 0.0
  %2027 = vmatpush2.msra.mxu0 0.0
  %2028 = vmatprep.subr.mxu0 0.0
  %2029 = vmatpush2.msra.mxu0 0.0
  %2030 = vmatprep.subr.mxu0 0.0
  %2031 = vmatpush2.msra.mxu0 0.0
  %2032 = vmatprep.subr.mxu0 0.0
  %2033 = vmatpush2.msra.mxu0 0.0
  %2034 = vmatprep.subr.mxu0 0.0
  %2035 = vmatpush2.msra.mxu0 0.0
  %2036 = vmatprep.subr.mxu0 0.0
  %2037 = vmatpush2.msra.mxu0 0.0
  %2038 = vmatprep.subr.mxu0 0.0
  %2039 = vmatpush2.msra.mxu0 0.0
  %2040 = vmatprep.subr.mxu0 0.0
  %2041 = vmatpush2.msra.mxu0 0.0
  %2042 = vmatprep.subr.mxu0 0.0
  %2043 = vmatpush2.msra.mxu0 0.0
  %2044 = vmatprep.subr.mxu0 0.0
  %2045 = vmatpush2.msra.mxu0 0.0
  %2046 = vmatprep.subr.mxu0 0.0
  %2047 = vmatpush2.msra.mxu0 0.0
  %2048 = vmatprep.mubr.f32.mxu0 0.0
  %2049 = vmatmul.mubr.f32.gmra.mxu0 %v1556
  %v2050 = vpop.f32.mrf.mxu0
  %v2051 = vadd.f32 %v669, %v2050
  %v2052 = vpop.f32.mrf.mxu0
  %v2053 = vadd.f32 %v669, %v2052
  %2054 = vdwg.mxu0
  %2055 = vmatprep.subr.mxu0 0.0
  %2056 = vmatpush1.msra.mxu0 0.0
  %2057 = vmatprep.subr.mxu0 0.0
  %2058 = vmatpush1.msra.mxu0 0.0
  %2059 = vmatprep.subr.mxu0 0.0
  %2060 = vmatpush1.msra.mxu0 0.0
  %2061 = vmatprep.subr.mxu0 0.0
  %2062 = vmatpush1.msra.mxu0 0.0
  %2063 = vmatprep.subr.mxu0 0.0
  %2064 = vmatpush1.msra.mxu0 0.0
  %2065 = vmatprep.subr.mxu0 0.0
  %2066 = vmatpush1.msra.mxu0 0.0
  %2067 = vmatprep.subr.mxu0 0.0
  %2068 = vmatpush1.msra.mxu0 0.0
  %2069 = vmatprep.subr.mxu0 %v1329
  %2070 = vmatpush1.msra.mxu0 %v1328
  %2071 = vmatprep.subr.mxu0 %v1305
  %2072 = vmatpush1.msra.mxu0 %v1304
  %2073 = vmatprep.subr.mxu0 %v1281
  %2074 = vmatpush1.msra.mxu0 %v1280
  %2075 = vmatprep.subr.mxu0 %v1257
  %2076 = vmatpush1.msra.mxu0 %v1256
  %2077 = vmatprep.subr.mxu0 %v1233
  %2078 = vmatpush1.msra.mxu0 %v1232
  %2079 = vmatprep.subr.mxu0 %v1209
  %2080 = vmatpush1.msra.mxu0 %v1208
  %2081 = vmatprep.subr.mxu0 %v1185
  %2082 = vmatpush1.msra.mxu0 %v1184
  %2083 = vmatprep.subr.mxu0 %v1161
  %2084 = vmatpush1.msra.mxu0 %v1160
  %2085 = vmatprep.subr.mxu0 %v1137
  %2086 = vmatpush1.msra.mxu0 %v1136
  %2087 = vmatprep.subr.mxu0 0.0
  %2088 = vmatpush2.msra.mxu0 0.0
  %2089 = vmatprep.subr.mxu0 0.0
  %2090 = vmatpush2.msra.mxu0 0.0
  %2091 = vmatprep.subr.mxu0 0.0
  %2092 = vmatpush2.msra.mxu0 0.0
  %2093 = vmatprep.subr.mxu0 0.0
  %2094 = vmatpush2.msra.mxu0 0.0
  %2095 = vmatprep.subr.mxu0 0.0
  %2096 = vmatpush2.msra.mxu0 0.0
  %2097 = vmatprep.subr.mxu0 0.0
  %2098 = vmatpush2.msra.mxu0 0.0
  %2099 = vmatprep.subr.mxu0 0.0
  %2100 = vmatpush2.msra.mxu0 0.0
  %2101 = vmatprep.subr.mxu0 0.0
  %2102 = vmatpush2.msra.mxu0 0.0
  %2103 = vmatprep.subr.mxu0 0.0
  %2104 = vmatpush2.msra.mxu0 0.0
  %2105 = vmatprep.subr.mxu0 0.0
  %2106 = vmatpush2.msra.mxu0 0.0
  %2107 = vmatprep.subr.mxu0 0.0
  %2108 = vmatpush2.msra.mxu0 0.0
  %2109 = vmatprep.subr.mxu0 0.0
  %2110 = vmatpush2.msra.mxu0 0.0
  %2111 = vmatprep.subr.mxu0 0.0
  %2112 = vmatpush2.msra.mxu0 0.0
  %2113 = vmatprep.subr.mxu0 0.0
  %2114 = vmatpush2.msra.mxu0 0.0
  %2115 = vmatprep.subr.mxu0 0.0
  %2116 = vmatpush2.msra.mxu0 0.0
  %2117 = vmatprep.subr.mxu0 0.0
  %2118 = vmatpush2.msra.mxu0 0.0
  %2119 = vmatprep.mubr.f32.mxu0 0.0
  %2120 = vmatmul.mubr.f32.gmra.mxu0 %v1556
  %v2121 = vpop.f32.mrf.mxu0
  %v2122 = vadd.f32 %v669, %v2121
  %v2123 = vpop.f32.mrf.mxu0
  %v2124 = vadd.f32 %v669, %v2123
  %2125 = vdwg.mxu0
  %2126 = vmatprep.subr.mxu0 0.0
  %2127 = vmatpush1.msra.mxu0 0.0
  %2128 = vmatprep.subr.mxu0 0.0
  %2129 = vmatpush1.msra.mxu0 0.0
  %2130 = vmatprep.subr.mxu0 0.0
  %2131 = vmatpush1.msra.mxu0 0.0
  %2132 = vmatprep.subr.mxu0 0.0
  %2133 = vmatpush1.msra.mxu0 0.0
  %2134 = vmatprep.subr.mxu0 0.0
  %2135 = vmatpush1.msra.mxu0 0.0
  %2136 = vmatprep.subr.mxu0 0.0
  %2137 = vmatpush1.msra.mxu0 0.0
  %2138 = vmatprep.subr.mxu0 0.0
  %2139 = vmatpush1.msra.mxu0 0.0
  %2140 = vmatprep.subr.mxu0 %v1331
  %2141 = vmatpush1.msra.mxu0 %v1330
  %2142 = vmatprep.subr.mxu0 %v1307
  %2143 = vmatpush1.msra.mxu0 %v1306
  %2144 = vmatprep.subr.mxu0 %v1283
  %2145 = vmatpush1.msra.mxu0 %v1282
  %2146 = vmatprep.subr.mxu0 %v1259
  %2147 = vmatpush1.msra.mxu0 %v1258
  %2148 = vmatprep.subr.mxu0 %v1235
  %2149 = vmatpush1.msra.mxu0 %v1234
  %2150 = vmatprep.subr.mxu0 %v1211
  %2151 = vmatpush1.msra.mxu0 %v1210
  %2152 = vmatprep.subr.mxu0 %v1187
  %2153 = vmatpush1.msra.mxu0 %v1186
  %2154 = vmatprep.subr.mxu0 %v1163
  %2155 = vmatpush1.msra.mxu0 %v1162
  %2156 = vmatprep.subr.mxu0 %v1139
  %2157 = vmatpush1.msra.mxu0 %v1138
  %2158 = vmatprep.subr.mxu0 0.0
  %2159 = vmatpush2.msra.mxu0 0.0
  %2160 = vmatprep.subr.mxu0 0.0
  %2161 = vmatpush2.msra.mxu0 0.0
  %2162 = vmatprep.subr.mxu0 0.0
  %2163 = vmatpush2.msra.mxu0 0.0
  %2164 = vmatprep.subr.mxu0 0.0
  %2165 = vmatpush2.msra.mxu0 0.0
  %2166 = vmatprep.subr.mxu0 0.0
  %2167 = vmatpush2.msra.mxu0 0.0
  %2168 = vmatprep.subr.mxu0 0.0
  %2169 = vmatpush2.msra.mxu0 0.0
  %2170 = vmatprep.subr.mxu0 0.0
  %2171 = vmatpush2.msra.mxu0 0.0
  %2172 = vmatprep.subr.mxu0 0.0
  %2173 = vmatpush2.msra.mxu0 0.0
  %2174 = vmatprep.subr.mxu0 0.0
  %2175 = vmatpush2.msra.mxu0 0.0
  %2176 = vmatprep.subr.mxu0 0.0
  %2177 = vmatpush2.msra.mxu0 0.0
  %2178 = vmatprep.subr.mxu0 0.0
  %2179 = vmatpush2.msra.mxu0 0.0
  %2180 = vmatprep.subr.mxu0 0.0
  %2181 = vmatpush2.msra.mxu0 0.0
  %2182 = vmatprep.subr.mxu0 0.0
  %2183 = vmatpush2.msra.mxu0 0.0
  %2184 = vmatprep.subr.mxu0 0.0
  %2185 = vmatpush2.msra.mxu0 0.0
  %2186 = vmatprep.subr.mxu0 0.0
  %2187 = vmatpush2.msra.mxu0 0.0
  %2188 = vmatprep.subr.mxu0 0.0
  %2189 = vmatpush2.msra.mxu0 0.0
  %2190 = vmatprep.mubr.f32.mxu0 0.0
  %2191 = vmatmul.mubr.f32.gmra.mxu0 %v1556
  %v2192 = vpop.f32.mrf.mxu0
  %v2193 = vadd.f32 %v669, %v2192
  %v2194 = vpop.f32.mrf.mxu0
  %v2195 = vadd.f32 %v669, %v2194
  %2196 = vdwg.mxu0
  %2197 = vmatprep.subr.mxu0 0.0
  %2198 = vmatpush1.msra.mxu0 0.0
  %2199 = vmatprep.subr.mxu0 0.0
  %2200 = vmatpush1.msra.mxu0 0.0
  %2201 = vmatprep.subr.mxu0 0.0
  %2202 = vmatpush1.msra.mxu0 0.0
  %2203 = vmatprep.subr.mxu0 0.0
  %2204 = vmatpush1.msra.mxu0 0.0
  %2205 = vmatprep.subr.mxu0 0.0
  %2206 = vmatpush1.msra.mxu0 0.0
  %2207 = vmatprep.subr.mxu0 0.0
  %2208 = vmatpush1.msra.mxu0 0.0
  %2209 = vmatprep.subr.mxu0 0.0
  %2210 = vmatpush1.msra.mxu0 0.0
  %2211 = vmatprep.subr.mxu0 %v1333
  %2212 = vmatpush1.msra.mxu0 %v1332
  %2213 = vmatprep.subr.mxu0 %v1309
  %2214 = vmatpush1.msra.mxu0 %v1308
  %2215 = vmatprep.subr.mxu0 %v1285
  %2216 = vmatpush1.msra.mxu0 %v1284
  %2217 = vmatprep.subr.mxu0 %v1261
  %2218 = vmatpush1.msra.mxu0 %v1260
  %2219 = vmatprep.subr.mxu0 %v1237
  %2220 = vmatpush1.msra.mxu0 %v1236
  %2221 = vmatprep.subr.mxu0 %v1213
  %2222 = vmatpush1.msra.mxu0 %v1212
  %2223 = vmatprep.subr.mxu0 %v1189
  %2224 = vmatpush1.msra.mxu0 %v1188
  %2225 = vmatprep.subr.mxu0 %v1165
  %2226 = vmatpush1.msra.mxu0 %v1164
  %2227 = vmatprep.subr.mxu0 %v1141
  %2228 = vmatpush1.msra.mxu0 %v1140
  %2229 = vmatprep.subr.mxu0 0.0
  %2230 = vmatpush2.msra.mxu0 0.0
  %2231 = vmatprep.subr.mxu0 0.0
  %2232 = vmatpush2.msra.mxu0 0.0
  %2233 = vmatprep.subr.mxu0 0.0
  %2234 = vmatpush2.msra.mxu0 0.0
  %2235 = vmatprep.subr.mxu0 0.0
  %2236 = vmatpush2.msra.mxu0 0.0
  %2237 = vmatprep.subr.mxu0 0.0
  %2238 = vmatpush2.msra.mxu0 0.0
  %2239 = vmatprep.subr.mxu0 0.0
  %2240 = vmatpush2.msra.mxu0 0.0
  %2241 = vmatprep.subr.mxu0 0.0
  %2242 = vmatpush2.msra.mxu0 0.0
  %2243 = vmatprep.subr.mxu0 0.0
  %2244 = vmatpush2.msra.mxu0 0.0
  %2245 = vmatprep.subr.mxu0 0.0
  %2246 = vmatpush2.msra.mxu0 0.0
  %2247 = vmatprep.subr.mxu0 0.0
  %2248 = vmatpush2.msra.mxu0 0.0
  %2249 = vmatprep.subr.mxu0 0.0
  %2250 = vmatpush2.msra.mxu0 0.0
  %2251 = vmatprep.subr.mxu0 0.0
  %2252 = vmatpush2.msra.mxu0 0.0
  %2253 = vmatprep.subr.mxu0 0.0
  %2254 = vmatpush2.msra.mxu0 0.0
  %2255 = vmatprep.subr.mxu0 0.0
  %2256 = vmatpush2.msra.mxu0 0.0
  %2257 = vmatprep.subr.mxu0 0.0
  %2258 = vmatpush2.msra.mxu0 0.0
  %2259 = vmatprep.subr.mxu0 0.0
  %2260 = vmatpush2.msra.mxu0 0.0
  %2261 = vmatprep.mubr.f32.mxu0 0.0
  %2262 = vmatmul.mubr.f32.gmra.mxu0 %v1556
  %v2263 = vpop.f32.mrf.mxu0
  %v2264 = vadd.f32 %v669, %v2263
  %v2265 = vpop.f32.mrf.mxu0
  %v2266 = vadd.f32 %v669, %v2265
  %2267 = vdwg.mxu0
  %2268 = vmatprep.subr.mxu0 0.0
  %2269 = vmatpush1.msra.mxu0 0.0
  %2270 = vmatprep.subr.mxu0 0.0
  %2271 = vmatpush1.msra.mxu0 0.0
  %2272 = vmatprep.subr.mxu0 0.0
  %2273 = vmatpush1.msra.mxu0 0.0
  %2274 = vmatprep.subr.mxu0 0.0
  %2275 = vmatpush1.msra.mxu0 0.0
  %2276 = vmatprep.subr.mxu0 0.0
  %2277 = vmatpush1.msra.mxu0 0.0
  %2278 = vmatprep.subr.mxu0 0.0
  %2279 = vmatpush1.msra.mxu0 0.0
  %2280 = vmatprep.subr.mxu0 0.0
  %2281 = vmatpush1.msra.mxu0 0.0
  %2282 = vmatprep.subr.mxu0 %v1335
  %2283 = vmatpush1.msra.mxu0 %v1334
  %2284 = vmatprep.subr.mxu0 %v1311
  %2285 = vmatpush1.msra.mxu0 %v1310
  %2286 = vmatprep.subr.mxu0 %v1287
  %2287 = vmatpush1.msra.mxu0 %v1286
  %2288 = vmatprep.subr.mxu0 %v1263
  %2289 = vmatpush1.msra.mxu0 %v1262
  %2290 = vmatprep.subr.mxu0 %v1239
  %2291 = vmatpush1.msra.mxu0 %v1238
  %2292 = vmatprep.subr.mxu0 %v1215
  %2293 = vmatpush1.msra.mxu0 %v1214
  %2294 = vmatprep.subr.mxu0 %v1191
  %2295 = vmatpush1.msra.mxu0 %v1190
  %2296 = vmatprep.subr.mxu0 %v1167
  %2297 = vmatpush1.msra.mxu0 %v1166
  %2298 = vmatprep.subr.mxu0 %v1143
  %2299 = vmatpush1.msra.mxu0 %v1142
  %2300 = vmatprep.subr.mxu0 0.0
  %2301 = vmatpush2.msra.mxu0 0.0
  %2302 = vmatprep.subr.mxu0 0.0
  %2303 = vmatpush2.msra.mxu0 0.0
  %2304 = vmatprep.subr.mxu0 0.0
  %2305 = vmatpush2.msra.mxu0 0.0
  %2306 = vmatprep.subr.mxu0 0.0
  %2307 = vmatpush2.msra.mxu0 0.0
  %2308 = vmatprep.subr.mxu0 0.0
  %2309 = vmatpush2.msra.mxu0 0.0
  %2310 = vmatprep.subr.mxu0 0.0
  %2311 = vmatpush2.msra.mxu0 0.0
  %2312 = vmatprep.subr.mxu0 0.0
  %2313 = vmatpush2.msra.mxu0 0.0
  %2314 = vmatprep.subr.mxu0 0.0
  %2315 = vmatpush2.msra.mxu0 0.0
  %2316 = vmatprep.subr.mxu0 0.0
  %2317 = vmatpush2.msra.mxu0 0.0
  %2318 = vmatprep.subr.mxu0 0.0
  %2319 = vmatpush2.msra.mxu0 0.0
  %2320 = vmatprep.subr.mxu0 0.0
  %2321 = vmatpush2.msra.mxu0 0.0
  %2322 = vmatprep.subr.mxu0 0.0
  %2323 = vmatpush2.msra.mxu0 0.0
  %2324 = vmatprep.subr.mxu0 0.0
  %2325 = vmatpush2.msra.mxu0 0.0
  %2326 = vmatprep.subr.mxu0 0.0
  %2327 = vmatpush2.msra.mxu0 0.0
  %2328 = vmatprep.subr.mxu0 0.0
  %2329 = vmatpush2.msra.mxu0 0.0
  %2330 = vmatprep.subr.mxu0 0.0
  %2331 = vmatpush2.msra.mxu0 0.0
  %2332 = vmatprep.mubr.f32.mxu0 0.0
  %2333 = vmatmul.mubr.f32.gmra.mxu0 %v1556
  %v2334 = vpop.f32.mrf.mxu0
  %v2335 = vadd.f32 %v669, %v2334
  %v2336 = vpop.f32.mrf.mxu0
  %v2337 = vadd.f32 %v669, %v2336
  %2338 = vdwg.mxu0
  %2339 = vmatprep.subr.mxu0 0.0
  %2340 = vmatpush1.msra.mxu0 0.0
  %2341 = vmatprep.subr.mxu0 0.0
  %2342 = vmatpush1.msra.mxu0 0.0
  %2343 = vmatprep.subr.mxu0 0.0
  %2344 = vmatpush1.msra.mxu0 0.0
  %2345 = vmatprep.subr.mxu0 0.0
  %2346 = vmatpush1.msra.mxu0 0.0
  %2347 = vmatprep.subr.mxu0 0.0
  %2348 = vmatpush1.msra.mxu0 0.0
  %2349 = vmatprep.subr.mxu0 0.0
  %2350 = vmatpush1.msra.mxu0 0.0
  %2351 = vmatprep.subr.mxu0 0.0
  %2352 = vmatpush1.msra.mxu0 0.0
  %2353 = vmatprep.subr.mxu0 %v1337
  %2354 = vmatpush1.msra.mxu0 %v1336
  %2355 = vmatprep.subr.mxu0 %v1313
  %2356 = vmatpush1.msra.mxu0 %v1312
  %2357 = vmatprep.subr.mxu0 %v1289
  %2358 = vmatpush1.msra.mxu0 %v1288
  %2359 = vmatprep.subr.mxu0 %v1265
  %2360 = vmatpush1.msra.mxu0 %v1264
  %2361 = vmatprep.subr.mxu0 %v1241
  %2362 = vmatpush1.msra.mxu0 %v1240
  %2363 = vmatprep.subr.mxu0 %v1217
  %2364 = vmatpush1.msra.mxu0 %v1216
  %2365 = vmatprep.subr.mxu0 %v1193
  %2366 = vmatpush1.msra.mxu0 %v1192
  %2367 = vmatprep.subr.mxu0 %v1169
  %2368 = vmatpush1.msra.mxu0 %v1168
  %2369 = vmatprep.subr.mxu0 %v1145
  %2370 = vmatpush1.msra.mxu0 %v1144
  %2371 = vmatprep.subr.mxu0 0.0
  %2372 = vmatpush2.msra.mxu0 0.0
  %2373 = vmatprep.subr.mxu0 0.0
  %2374 = vmatpush2.msra.mxu0 0.0
  %2375 = vmatprep.subr.mxu0 0.0
  %2376 = vmatpush2.msra.mxu0 0.0
  %2377 = vmatprep.subr.mxu0 0.0
  %2378 = vmatpush2.msra.mxu0 0.0
  %2379 = vmatprep.subr.mxu0 0.0
  %2380 = vmatpush2.msra.mxu0 0.0
  %2381 = vmatprep.subr.mxu0 0.0
  %2382 = vmatpush2.msra.mxu0 0.0
  %2383 = vmatprep.subr.mxu0 0.0
  %2384 = vmatpush2.msra.mxu0 0.0
  %2385 = vmatprep.subr.mxu0 0.0
  %2386 = vmatpush2.msra.mxu0 0.0
  %2387 = vmatprep.subr.mxu0 0.0
  %2388 = vmatpush2.msra.mxu0 0.0
  %2389 = vmatprep.subr.mxu0 0.0
  %2390 = vmatpush2.msra.mxu0 0.0
  %2391 = vmatprep.subr.mxu0 0.0
  %2392 = vmatpush2.msra.mxu0 0.0
  %2393 = vmatprep.subr.mxu0 0.0
  %2394 = vmatpush2.msra.mxu0 0.0
  %2395 = vmatprep.subr.mxu0 0.0
  %2396 = vmatpush2.msra.mxu0 0.0
  %2397 = vmatprep.subr.mxu0 0.0
  %2398 = vmatpush2.msra.mxu0 0.0
  %2399 = vmatprep.subr.mxu0 0.0
  %2400 = vmatpush2.msra.mxu0 0.0
  %2401 = vmatprep.subr.mxu0 0.0
  %2402 = vmatpush2.msra.mxu0 0.0
  %2403 = vmatprep.mubr.f32.mxu0 0.0
  %2404 = vmatmul.mubr.f32.gmra.mxu0 %v1556
  %v2405 = vpop.f32.mrf.mxu0
  %v2406 = vadd.f32 %v669, %v2405
  %v2407 = vpop.f32.mrf.mxu0
  %v2408 = vadd.f32 %v669, %v2407
  %2409 = vdwg.mxu0
  %v2410 = vmax.f32 %v1625, 0.0
  %v2411 = vmax.f32 %v1627, 0.0
  %v2412 = vmax.f32 %v1696, 0.0
  %v2413 = vmax.f32 %v1698, 0.0
  %v2414 = vmax.f32 %v1767, 0.0
  %v2415 = vmax.f32 %v1769, 0.0
  %v2416 = vmax.f32 %v1838, 0.0
  %v2417 = vmax.f32 %v1840, 0.0
  %v2418 = vmax.f32 %v1909, 0.0
  %v2419 = vmax.f32 %v1911, 0.0
  %v2420 = vmax.f32 %v1980, 0.0
  %v2421 = vmax.f32 %v1982, 0.0
  %v2422 = vmax.f32 %v2051, 0.0
  %v2423 = vmax.f32 %v2053, 0.0
  %v2424 = vmax.f32 %v2122, 0.0
  %v2425 = vmax.f32 %v2124, 0.0
  %v2426 = vmax.f32 %v2193, 0.0
  %v2427 = vmax.f32 %v2195, 0.0
  %v2428 = vmax.f32 %v2264, 0.0
  %v2429 = vmax.f32 %v2266, 0.0
  %v2430 = vmax.f32 %v2335, 0.0
  %v2431 = vmax.f32 %v2337, 0.0
  %v2432 = vmax.f32 %v2406, 0.0
  %v2433 = vmax.f32 %v2408, 0.0
  %v2434 = vadd.f32 %v2410, %v2416
  %v2435 = vadd.f32 %v2411, %v2417
  %v2436 = vadd.f32 %v2412, %v2418
  %v2437 = vadd.f32 %v2413, %v2419
  %v2438 = vadd.f32 %v2414, %v2420
  %v2439 = vadd.f32 %v2415, %v2421
  %v2440 = vadd.f32 %v2434, %v2422
  %v2441 = vadd.f32 %v2435, %v2423
  %v2442 = vadd.f32 %v2436, %v2424
  %v2443 = vadd.f32 %v2437, %v2425
  %v2444 = vadd.f32 %v2438, %v2426
  %v2445 = vadd.f32 %v2439, %v2427
  %v2446 = vadd.f32 %v2440, %v2428
  %v2447 = vadd.f32 %v2441, %v2429
  %v2448 = vadd.f32 %v2442, %v2430
  %v2449 = vadd.f32 %v2443, %v2431
  %v2450 = vadd.f32 %v2444, %v2432
  %v2451 = vadd.f32 %v2445, %v2433
  %v2452 = vmul.f32 %v2446, 0.25
  %v2453 = vmul.f32 %v2447, 0.25
  %v2454 = vmul.f32 %v2448, 0.25
  %v2455 = vmul.f32 %v2449, 0.25
  %v2456 = vmul.f32 %v2450, 0.25
  %v2457 = vmul.f32 %v2451, 0.25
  %2458 = vst [vmem:[%s3] sm:$0xff] %v2452
  %2459 = vst [vmem:[%s3 + $0x8] sm:$0xff] %v2453
  %2460 = vst [vmem:[%s3 + $0x10] sm:$0xff] %v2454
  %2461 = vst [vmem:[%s3 + $0x18] sm:$0xff] %v2455
  %2462 = vst [vmem:[%s3 + $0x20] sm:$0xff] %v2456
  %2463 = vst [vmem:[%s3 + $0x28] sm:$0xff] %v2457
  // Predicated region
  $region14: #{tta_forward.1} parent=0 // pred_check
    _
  $region15: #{tta_forward.1} parent=0 // pred_check_branch
    %2465 = sbr.rel (0) target = $region17
  $region16: #{tta_forward.1} parent=0 // pred_region
    _
  $region17: #{tta_forward.1} parent=0 // pred_fallthru
    _
  // Predicated region
  $region18: #{tta_forward.1} parent=0 // pred_check
    _
  $region19: #{tta_forward.1} parent=0 // pred_check_branch
    %2467 = sbr.rel (0) target = $region21
  $region20: #{tta_forward.1} parent=0 // pred_region
    _
  $region21: #{tta_forward.1} parent=0 // pred_fallthru
    _

</llo_original>
